<compile_context>
chip_gen: v6e
topology: v6e:2x2x1
jax: 0.10.0
libtpu: 0.0.40
codegen_flags: <defaults>
</compile_context>

<pallas_src>
from functools import partial

import jax
import jax.numpy as jnp
from jax.experimental import pallas as pl
from jax.experimental.pallas import tpu as pltpu


def _round_up(x, m):
    return (x + m - 1) // m * m


def _nfq_kernel(x_ref, w1_ref, b1_ref, w2_ref, b2_ref, o_ref, *, d_in, use_vpu_l1):
    """One batch tile: relu(x @ W1 + b1) @ W2 + b2, f32 accumulation throughout."""
    if use_vpu_l1:
        # Tiny contraction dim: K broadcast-FMAs on the VPU instead of an MXU
        # matmul that would use ~K/256 of the systolic array. Pure f32
        # elementwise (portable to v5e's f32-only VPU).
        x = x_ref[...].astype(jnp.float32)        # (TB, Dp)
        w1 = w1_ref[...].astype(jnp.float32)      # (Dp, Hp)
        h = x[:, 0:1] * w1[0:1, :] + b1_ref[...]  # (TB, Hp) + (1, Hp)
        for k in range(1, d_in):                  # static unroll; padded cols are 0
            h = h + x[:, k:k + 1] * w1[k:k + 1, :]
    else:
        h = jnp.dot(x_ref[...], w1_ref[...], preferred_element_type=jnp.float32)
        h = h + b1_ref[...]                       # (TB, Hp) + (1, Hp)
    h = jnp.maximum(h, 0.0)

    # Second layer on the MXU (K = Hp = 256 lane-aligned), f32 accumulation.
    out = jnp.dot(h.astype(w2_ref.dtype), w2_ref[...],
                  preferred_element_type=jnp.float32)
    out = out + b2_ref[...]                       # (TB, A) + (1, A)
    o_ref[...] = out.astype(o_ref.dtype)


def nfq_forward(x, w1, b1, w2, b2, *, batch_tile=256, compute_dtype=None):
    """NFQ forward pass.

    x : (B, D_in)          activations
    w1: (D_in, H), b1: (H,) or (1, H)
    w2: (H, A),    b2: (A,) or (1, A)
    batch_tile   : rows per grid step (256 for v6e/v7x, 128 for v5e); shrunk
                   automatically if the batch itself is smaller.
    compute_dtype: dtype fed to the MXU (e.g. jnp.bfloat16 on v6e/v7x);
                   biases, accumulation and ReLU stay f32.
    """
    B, D_in = x.shape
    H = w1.shape[1]
    A = w2.shape[1]
    out_dtype = x.dtype
    if compute_dtype is None:
        compute_dtype = x.dtype

    b1 = b1.reshape(1, -1)
    b2 = b2.reshape(1, -1)

    # Don't pad a tiny batch all the way up to batch_tile worth of dead rows;
    # a single sublane-aligned tile is enough then.
    batch_tile = min(batch_tile, _round_up(B, 8))

    # Zero-padding (numerically exact): hidden -> lane multiple (128),
    # D_in -> sublane multiple (8), batch -> batch_tile multiple.
    Hp = _round_up(H, 128)
    Dp = _round_up(D_in, 8)
    Bp = _round_up(B, batch_tile)

    xp = jnp.zeros((Bp, Dp), compute_dtype).at[:B, :D_in].set(x.astype(compute_dtype))
    w1p = jnp.zeros((Dp, Hp), compute_dtype).at[:D_in, :H].set(w1.astype(compute_dtype))
    b1p = jnp.zeros((1, Hp), jnp.float32).at[:, :H].set(b1.astype(jnp.float32))
    w2p = jnp.zeros((Hp, A), compute_dtype).at[:H, :].set(w2.astype(compute_dtype))
    b2p = b2.astype(jnp.float32)

    use_vpu_l1 = D_in <= 8
    kernel = partial(_nfq_kernel, d_in=D_in, use_vpu_l1=use_vpu_l1)

    grid = (Bp // batch_tile,)
    out = pl.pallas_call(
        kernel,
        out_shape=jax.ShapeDtypeStruct((Bp, A), out_dtype),
        grid_spec=pltpu.PrefetchScalarGridSpec(
            num_scalar_prefetch=0,
            grid=grid,
            in_specs=[
                # activations tiled over the batch axis
                pl.BlockSpec((batch_tile, Dp), lambda i: (i, 0)),
                # weights / biases: constant block index -> stay resident in
                # VMEM across all grid steps (no per-step re-DMA).
                pl.BlockSpec((Dp, Hp), lambda i: (0, 0)),
                pl.BlockSpec((1, Hp), lambda i: (0, 0)),
                pl.BlockSpec((Hp, A), lambda i: (0, 0)),
                pl.BlockSpec((1, A), lambda i: (0, 0)),
            ],
            out_specs=pl.BlockSpec((batch_tile, A), lambda i: (i, 0)),
        ),
        compiler_params=pltpu.CompilerParams(
            dimension_semantics=("parallel",),
        ),
    )(xp, w1p, b1p, w2p, b2p)
    return out[:B]


def init_params(key, env_inputs, n_actions, hidden=200, dtype=jnp.float32):
    """Deterministic synthetic init (uniform, PyTorch-Linear-like bounds)."""
    k1, k2, k3, k4 = jax.random.split(key, 4)
    bound1 = 1.0 / (env_inputs ** 0.5)
    bound2 = 1.0 / (hidden ** 0.5)
    w1 = jax.random.uniform(k1, (env_inputs, hidden), dtype, -bound1, bound1)
    b1 = jax.random.uniform(k2, (hidden,), dtype, -bound1, bound1)
    w2 = jax.random.uniform(k3, (hidden, n_actions), dtype, -bound2, bound2)
    b2 = jax.random.uniform(k4, (n_actions,), dtype, -bound2, bound2)
    return w1, b1, w2, b2


if __name__ == "__main__":
    key = jax.random.PRNGKey(0)
    env_inputs, n_actions, batch = 4, 3, 512   # 2 grid steps at tile=256 (v7x megacore)

    kx, kp = jax.random.split(key)
    x = jax.random.normal(kx, (batch, env_inputs), jnp.float32)
    w1, b1, w2, b2 = init_params(kp, env_inputs, n_actions)

    # Pure-JAX reference of the forward semantics
    ref = jnp.maximum(x @ w1 + b1[None, :], 0.0) @ w2 + b2[None, :]

    # f32 path (portable / v5e-safe)
    out_f32 = jax.block_until_ready(
        nfq_forward(x, w1, b1, w2, b2, batch_tile=256, compute_dtype=jnp.float32))
    assert out_f32.shape == (batch, n_actions)
    assert jnp.allclose(out_f32, ref, atol=1e-2, rtol=1e-2), "f32 mismatch vs reference"

    # bf16 MXU path (fast path on v6e/v7x), f32 accumulation -> relaxed tolerance
    out_bf16 = jax.block_until_ready(
        nfq_forward(x, w1, b1, w2, b2, batch_tile=256, compute_dtype=jnp.bfloat16))
    assert out_bf16.shape == (batch, n_actions)
    assert jnp.allclose(out_bf16, ref, atol=5e-2, rtol=5e-2), "bf16 mismatch vs reference"

    # ragged batch (exercises wrapper-side batch padding)
    out_rag = jax.block_until_ready(
        nfq_forward(x[:37], w1, b1, w2, b2, batch_tile=256, compute_dtype=jnp.float32))
    assert out_rag.shape == (37, n_actions)
    assert jnp.allclose(out_rag, ref[:37], atol=1e-2, rtol=1e-2), "ragged mismatch"

    # tiny batch (exercises automatic tile shrink, single grid step)
    out_tiny = jax.block_until_ready(
        nfq_forward(x[:2], w1, b1, w2, b2, batch_tile=256, compute_dtype=jnp.float32))
    assert out_tiny.shape == (2, n_actions)
    assert jnp.allclose(out_tiny, ref[:2], atol=1e-2, rtol=1e-2), "tiny-batch mismatch"

    print("KERNEL_OK")
</pallas_src>

<mosaic_0001>
module attributes {stable_mosaic.version = 11 : i64} {
  func.func @_nfq_kernel(%arg0: i32, %arg1: memref<256x8xf32, #tpu.memory_space<vmem>>, %arg2: memref<8x256xf32, #tpu.memory_space<vmem>>, %arg3: memref<1x256xf32, #tpu.memory_space<vmem>>, %arg4: memref<256x3xf32, #tpu.memory_space<vmem>>, %arg5: memref<1x3xf32, #tpu.memory_space<vmem>>, %arg6: memref<256x3xf32, #tpu.memory_space<vmem>>) attributes {dimension_semantics = [#tpu.dimension_semantics<parallel>], iteration_bounds = array<i64: 2>, scalar_prefetch = 0 : i64, scratch_operands = 0 : i64, tpu.core_type = #tpu.core_type<tc>, window_params = [{transform_indices = @transform_0, window_bounds = array<i64: 256, 8>}, {pipeline_mode = #tpu.pipeline_mode<synchronous>, transform_indices = @transform_1, window_bounds = array<i64: 8, 256>}, {pipeline_mode = #tpu.pipeline_mode<synchronous>, transform_indices = @transform_2, window_bounds = array<i64: 1, 256>}, {pipeline_mode = #tpu.pipeline_mode<synchronous>, transform_indices = @transform_3, window_bounds = array<i64: 256, 3>}, {pipeline_mode = #tpu.pipeline_mode<synchronous>, transform_indices = @transform_4, window_bounds = array<i64: 1, 3>}, {transform_indices = @transform_5, window_bounds = array<i64: 256, 3>}]} {
    %c0 = arith.constant 0 : index
    %c0_0 = arith.constant 0 : index
    %0 = vector.load %arg1[%c0, %c0_0] : memref<256x8xf32, #tpu.memory_space<vmem>>, vector<256x8xf32>
    %c0_1 = arith.constant 0 : index
    %c0_2 = arith.constant 0 : index
    %1 = vector.load %arg2[%c0_1, %c0_2] : memref<8x256xf32, #tpu.memory_space<vmem>>, vector<8x256xf32>
    %2 = vector.extract_strided_slice %0 {offsets = [0, 0], sizes = [256, 1], strides = [1, 1]} : vector<256x8xf32> to vector<256x1xf32>
    %3 = vector.extract_strided_slice %1 {offsets = [0, 0], sizes = [1, 256], strides = [1, 1]} : vector<8x256xf32> to vector<1x256xf32>
    %4 = vector.broadcast %2 : vector<256x1xf32> to vector<256x256xf32>
    %5 = vector.broadcast %3 : vector<1x256xf32> to vector<256x256xf32>
    %6 = arith.mulf %4, %5 : vector<256x256xf32>
    %c0_3 = arith.constant 0 : index
    %c0_4 = arith.constant 0 : index
    %7 = vector.load %arg3[%c0_3, %c0_4] : memref<1x256xf32, #tpu.memory_space<vmem>>, vector<1x256xf32>
    %8 = vector.broadcast %7 : vector<1x256xf32> to vector<256x256xf32>
    %9 = arith.addf %6, %8 : vector<256x256xf32>
    %10 = vector.extract_strided_slice %0 {offsets = [0, 1], sizes = [256, 1], strides = [1, 1]} : vector<256x8xf32> to vector<256x1xf32>
    %11 = vector.extract_strided_slice %1 {offsets = [1, 0], sizes = [1, 256], strides = [1, 1]} : vector<8x256xf32> to vector<1x256xf32>
    %12 = vector.broadcast %10 : vector<256x1xf32> to vector<256x256xf32>
    %13 = vector.broadcast %11 : vector<1x256xf32> to vector<256x256xf32>
    %14 = arith.mulf %12, %13 : vector<256x256xf32>
    %15 = arith.addf %9, %14 : vector<256x256xf32>
    %16 = vector.extract_strided_slice %0 {offsets = [0, 2], sizes = [256, 1], strides = [1, 1]} : vector<256x8xf32> to vector<256x1xf32>
    %17 = vector.extract_strided_slice %1 {offsets = [2, 0], sizes = [1, 256], strides = [1, 1]} : vector<8x256xf32> to vector<1x256xf32>
    %18 = vector.broadcast %16 : vector<256x1xf32> to vector<256x256xf32>
    %19 = vector.broadcast %17 : vector<1x256xf32> to vector<256x256xf32>
    %20 = arith.mulf %18, %19 : vector<256x256xf32>
    %21 = arith.addf %15, %20 : vector<256x256xf32>
    %22 = vector.extract_strided_slice %0 {offsets = [0, 3], sizes = [256, 1], strides = [1, 1]} : vector<256x8xf32> to vector<256x1xf32>
    %23 = vector.extract_strided_slice %1 {offsets = [3, 0], sizes = [1, 256], strides = [1, 1]} : vector<8x256xf32> to vector<1x256xf32>
    %24 = vector.broadcast %22 : vector<256x1xf32> to vector<256x256xf32>
    %25 = vector.broadcast %23 : vector<1x256xf32> to vector<256x256xf32>
    %26 = arith.mulf %24, %25 : vector<256x256xf32>
    %27 = arith.addf %21, %26 : vector<256x256xf32>
    %cst = arith.constant 0.000000e+00 : f32
    %28 = vector.broadcast %cst : f32 to vector<256x256xf32>
    %29 = arith.maximumf %27, %28 : vector<256x256xf32>
    %c0_5 = arith.constant 0 : index
    %c0_6 = arith.constant 0 : index
    %30 = vector.load %arg4[%c0_5, %c0_6] : memref<256x3xf32, #tpu.memory_space<vmem>>, vector<256x3xf32>
    %cst_7 = arith.constant dense<0.000000e+00> : vector<256x3xf32>
    %31 = tpu.matmul %29, %30, %cst_7 {dimension_numbers = #tpu.dot_dimension_numbers<[1], [0], [0], [1], [0, 0, 1, 1], [], []>} : vector<256x256xf32>, vector<256x3xf32>, vector<256x3xf32> -> vector<256x3xf32>
    %c0_8 = arith.constant 0 : index
    %c0_9 = arith.constant 0 : index
    %32 = vector.load %arg5[%c0_8, %c0_9] : memref<1x3xf32, #tpu.memory_space<vmem>>, vector<1x3xf32>
    %33 = vector.broadcast %32 : vector<1x3xf32> to vector<256x3xf32>
    %34 = arith.addf %31, %33 : vector<256x3xf32>
    %c0_10 = arith.constant 0 : index
    %c0_11 = arith.constant 0 : index
    %35 = vector.load %arg6[%c0_10, %c0_11] : memref<256x3xf32, #tpu.memory_space<vmem>>, vector<256x3xf32>
    tpu.vector_store %arg6[%c0_10, %c0_11], %34 {strides = array<i32>} : memref<256x3xf32, #tpu.memory_space<vmem>>, vector<256x3xf32>,
    return
  }
  func.func @transform_0(%arg0: i32) -> (i32, i32) {
    %c0_i32 = arith.constant 0 : i32
    %c0_i32_0 = arith.constant 0 : i32
    return %arg0, %c0_i32 : i32, i32
  }
  func.func @transform_1(%arg0: i32) -> (i32, i32) {
    %c0_i32 = arith.constant 0 : i32
    %c0_i32_0 = arith.constant 0 : i32
    %c0_i32_1 = arith.constant 0 : i32
    return %c0_i32, %c0_i32_0 : i32, i32
  }
  func.func @transform_2(%arg0: i32) -> (i32, i32) {
    %c0_i32 = arith.constant 0 : i32
    %c0_i32_0 = arith.constant 0 : i32
    %c0_i32_1 = arith.constant 0 : i32
    return %c0_i32, %c0_i32_0 : i32, i32
  }
  func.func @transform_3(%arg0: i32) -> (i32, i32) {
    %c0_i32 = arith.constant 0 : i32
    %c0_i32_0 = arith.constant 0 : i32
    %c0_i32_1 = arith.constant 0 : i32
    return %c0_i32, %c0_i32_0 : i32, i32
  }
  func.func @transform_4(%arg0: i32) -> (i32, i32) {
    %c0_i32 = arith.constant 0 : i32
    %c0_i32_0 = arith.constant 0 : i32
    %c0_i32_1 = arith.constant 0 : i32
    return %c0_i32, %c0_i32_0 : i32, i32
  }
  func.func @transform_5(%arg0: i32) -> (i32, i32) {
    %c0_i32 = arith.constant 0 : i32
    %c0_i32_0 = arith.constant 0 : i32
    return %arg0, %c0_i32 : i32, i32
  }
}

</mosaic_0001>

<llo_original>
// kernel: tpu_custom_call.1
$region0: #{tpu_custom_call.1}
  #allocation0 [shape = 'u32[]', space=smem, size = 0x4, offset = 0x4, fixed_abs, tag = 'smem constant byte address 0x4 - core index']
  #allocation1 [shape = 'u32[144,128]{1,0:T(1,128)}', space=vmem, size = 0x12000, scoped, tag = 'internal scratch']
  %s0 = inlined_call_operand.vmem [shape: f32[512,8], index: 0, kind: input, shape index: {}]
  %s1 = inlined_call_operand.vmem [shape: f32[8,256], index: 1, kind: input, shape index: {}]
  %s2 = inlined_call_operand.vmem [shape: f32[1,256], index: 2, kind: input, shape index: {}]
  %s3 = inlined_call_operand.vmem [shape: f32[256,3], index: 3, kind: input, shape index: {}]
  %s4 = inlined_call_operand.vmem [shape: f32[1,3], index: 4, kind: input, shape index: {}]
  %s5 = inlined_call_operand.vmem [shape: f32[512,3], index: 5, kind: output, shape index: {}]
  %s6 = sld [smem:[#allocation0]]
  $region53: #{tpu_custom_call.1} parent=0
    _
  %s8 = ssub.s32 1, %s6
  %s9 = scalar_select 0, %s8, %s6
  loop: start=0, step=1, limit=4
  $region2: #{tpu_custom_call.1} parent=0 // loop_pre_header
    _
  $region3: #{tpu_custom_call.1} parent=0 // loop_header
    %s11 = sphi 0, %s15
    %p12 = scmp.ge.s32.totalorder %s11, 4
    %s21 = sphi 0, %s23
    %s24 = sphi 0, %s21
    %s25 = sphi 0, %s24
    %s41 = sphi 0, %s25
    %s45 = sphi 0, %s45
    %s47 = sphi 0, %s45
    %s48 = sphi 0, %s47
    %s62 = sphi 0, %s48
    %s66 = sphi 0, %s66
    %s68 = sphi 0, %s66
    %s69 = sphi 0, %s68
    %s83 = sphi 0, %s69
    %s87 = sphi 0, %s87
    %s89 = sphi 0, %s87
    %s90 = sphi 0, %s89
    %s104 = sphi 0, %s90
    %s108 = sphi 0, %s108
    %s110 = sphi 0, %s108
    %s111 = sphi 0, %s110
    %s125 = sphi 0, %s111
    %s131 = sphi 0, %s133
    %s134 = sphi 0, %s131
    %s135 = sphi 0, %s134
    %s151 = sphi 0, %s135
  $region4: #{tpu_custom_call.1} parent=0 // loop_header_branch
    %14 = sbr.rel (%p12) target = $region8
  $region5: #{tpu_custom_call.1} parent=0 // loop_body
    %s16 = ssub.s32 %s11, 1
    %s17 = ssub.s32 %s11, 2
    %s18 = sadd.s32 %s11, 1
    %s19 = ssub.s32 %s11, %s18
    %p20 = scmp.eq.s32.totalorder %s19, 0
    %s22 = sadd.s32 %s21, 1
    %s23 = scalar_select %p20, %s21, %s22
    %p26 = pneg %p20
    %p27 = scmp.eq.s32.totalorder %s11, 1
    %p28 = por %p26, %p27
    %p29 = scmp.ne.s32.totalorder %s21, %s24
    %p30 = scmp.eq.s32.totalorder %s11, 0
    %p31 = por %p29, %p30
    %p32 = scmp.ne.s32.totalorder %s21, %s24
    %p33 = scmp.eq.s32.totalorder %s16, 1
    %p34 = por %p32, %p33
    %p35 = scmp.ne.s32.totalorder %s24, %s25
    %p36 = scmp.eq.s32.totalorder %s16, 0
    %p37 = por %p35, %p36
    %p38 = scmp.ne.s32.totalorder %s24, %s25
    %p39 = scmp.eq.s32.totalorder %s17, 1
    %p40 = por %p38, %p39
    %p42 = scmp.ne.s32.totalorder %s25, %s41
    %p43 = scmp.eq.s32.totalorder %s17, 0
    %p44 = por %p42, %p43
    %s46 = sadd.s32 %s45, 1
    %p49 = scmp.eq.s32.totalorder %s11, 1
    %p50 = scmp.ne.s32.totalorder %s45, %s47
    %p51 = scmp.eq.s32.totalorder %s11, 0
    %p52 = por %p50, %p51
    %p53 = scmp.ne.s32.totalorder %s45, %s47
    %p54 = scmp.eq.s32.totalorder %s16, 1
    %p55 = por %p53, %p54
    %p56 = scmp.ne.s32.totalorder %s47, %s48
    %p57 = scmp.eq.s32.totalorder %s16, 0
    %p58 = por %p56, %p57
    %p59 = scmp.ne.s32.totalorder %s47, %s48
    %p60 = scmp.eq.s32.totalorder %s17, 1
    %p61 = por %p59, %p60
    %p63 = scmp.ne.s32.totalorder %s48, %s62
    %p64 = scmp.eq.s32.totalorder %s17, 0
    %p65 = por %p63, %p64
    %s67 = sadd.s32 %s66, 1
    %p70 = scmp.eq.s32.totalorder %s11, 1
    %p71 = scmp.ne.s32.totalorder %s66, %s68
    %p72 = scmp.eq.s32.totalorder %s11, 0
    %p73 = por %p71, %p72
    %p74 = scmp.ne.s32.totalorder %s66, %s68
    %p75 = scmp.eq.s32.totalorder %s16, 1
    %p76 = por %p74, %p75
    %p77 = scmp.ne.s32.totalorder %s68, %s69
    %p78 = scmp.eq.s32.totalorder %s16, 0
    %p79 = por %p77, %p78
    %p80 = scmp.ne.s32.totalorder %s68, %s69
    %p81 = scmp.eq.s32.totalorder %s17, 1
    %p82 = por %p80, %p81
    %p84 = scmp.ne.s32.totalorder %s69, %s83
    %p85 = scmp.eq.s32.totalorder %s17, 0
    %p86 = por %p84, %p85
    %s88 = sadd.s32 %s87, 1
    %p91 = scmp.eq.s32.totalorder %s11, 1
    %p92 = scmp.ne.s32.totalorder %s87, %s89
    %p93 = scmp.eq.s32.totalorder %s11, 0
    %p94 = por %p92, %p93
    %p95 = scmp.ne.s32.totalorder %s87, %s89
    %p96 = scmp.eq.s32.totalorder %s16, 1
    %p97 = por %p95, %p96
    %p98 = scmp.ne.s32.totalorder %s89, %s90
    %p99 = scmp.eq.s32.totalorder %s16, 0
    %p100 = por %p98, %p99
    %p101 = scmp.ne.s32.totalorder %s89, %s90
    %p102 = scmp.eq.s32.totalorder %s17, 1
    %p103 = por %p101, %p102
    %p105 = scmp.ne.s32.totalorder %s90, %s104
    %p106 = scmp.eq.s32.totalorder %s17, 0
    %p107 = por %p105, %p106
    %s109 = sadd.s32 %s108, 1
    %p112 = scmp.eq.s32.totalorder %s11, 1
    %p113 = scmp.ne.s32.totalorder %s108, %s110
    %p114 = scmp.eq.s32.totalorder %s11, 0
    %p115 = por %p113, %p114
    %p116 = scmp.ne.s32.totalorder %s108, %s110
    %p117 = scmp.eq.s32.totalorder %s16, 1
    %p118 = por %p116, %p117
    %p119 = scmp.ne.s32.totalorder %s110, %s111
    %p120 = scmp.eq.s32.totalorder %s16, 0
    %p121 = por %p119, %p120
    %p122 = scmp.ne.s32.totalorder %s110, %s111
    %p123 = scmp.eq.s32.totalorder %s17, 1
    %p124 = por %p122, %p123
    %p126 = scmp.ne.s32.totalorder %s111, %s125
    %p127 = scmp.eq.s32.totalorder %s17, 0
    %p128 = por %p126, %p127
    %s129 = ssub.s32 %s11, %s18
    %p130 = scmp.eq.s32.totalorder %s129, 0
    %s132 = sadd.s32 %s131, 1
    %s133 = scalar_select %p130, %s131, %s132
    %p136 = pneg %p130
    %p137 = scmp.eq.s32.totalorder %s11, 1
    %p138 = por %p136, %p137
    %p139 = scmp.ne.s32.totalorder %s131, %s134
    %p140 = scmp.eq.s32.totalorder %s11, 0
    %p141 = por %p139, %p140
    %p142 = scmp.ne.s32.totalorder %s131, %s134
    %p143 = scmp.eq.s32.totalorder %s16, 1
    %p144 = por %p142, %p143
    %p145 = scmp.ne.s32.totalorder %s134, %s135
    %p146 = scmp.eq.s32.totalorder %s16, 0
    %p147 = por %p145, %p146
    %p148 = scmp.ne.s32.totalorder %s134, %s135
    %p149 = scmp.eq.s32.totalorder %s17, 1
    %p150 = por %p148, %p149
    %p152 = scmp.ne.s32.totalorder %s135, %s151
    %p153 = scmp.eq.s32.totalorder %s17, 0
    %p154 = por %p152, %p153
    %p155 = scmp.le.s32.totalorder 1, %s11
    %p156 = scmp.lt.s32.totalorder %s11, 3
    %p157 = pnand %p155, %p156
    %p158 = pneg %p157
    // Predicated region
    $region9: #{tpu_custom_call.1} parent=5 // pred_check
      _
    $region10: #{tpu_custom_call.1} parent=5 // pred_check_branch
      %160 = sbr.rel (%p157) target = $region12
    $region11: #{tpu_custom_call.1} parent=5 // pred_region
      %s161 = ssub.s32 %s11, 1
      // Predicated region
      $region13: #{tpu_custom_call.1} parent=11 // pred_check
        %p162 = pneg %p58
      $region14: #{tpu_custom_call.1} parent=11 // pred_check_branch
        %164 = sbr.rel (%p162) target = $region16
      $region15: #{tpu_custom_call.1} parent=11 // pred_region
        _
      $region16: #{tpu_custom_call.1} parent=11 // pred_fallthru
        _
      // Predicated region
      $region17: #{tpu_custom_call.1} parent=11 // pred_check
        %p165 = pneg %p79
      $region18: #{tpu_custom_call.1} parent=11 // pred_check_branch
        %167 = sbr.rel (%p165) target = $region20
      $region19: #{tpu_custom_call.1} parent=11 // pred_region
        _
      $region20: #{tpu_custom_call.1} parent=11 // pred_fallthru
        _
      // Predicated region
      $region21: #{tpu_custom_call.1} parent=11 // pred_check
        %p168 = pneg %p100
      $region22: #{tpu_custom_call.1} parent=11 // pred_check_branch
        %170 = sbr.rel (%p168) target = $region24
      $region23: #{tpu_custom_call.1} parent=11 // pred_region
        _
      $region24: #{tpu_custom_call.1} parent=11 // pred_fallthru
        _
      // Predicated region
      $region25: #{tpu_custom_call.1} parent=11 // pred_check
        %p171 = pneg %p121
      $region26: #{tpu_custom_call.1} parent=11 // pred_check_branch
        %173 = sbr.rel (%p171) target = $region28
      $region27: #{tpu_custom_call.1} parent=11 // pred_region
        _
      $region28: #{tpu_custom_call.1} parent=11 // pred_fallthru
        _
    $region12: #{tpu_custom_call.1} parent=5 // pred_fallthru
      _
    %p174 = scmp.lt.s32.totalorder %s11, 2
    // Predicated region
    $region29: #{tpu_custom_call.1} parent=5 // pred_check
      %p175 = pneg %p174
    $region30: #{tpu_custom_call.1} parent=5 // pred_check_branch
      %177 = sbr.rel (%p175) target = $region32
    $region31: #{tpu_custom_call.1} parent=5 // pred_region
      // Predicated region
      $region33: #{tpu_custom_call.1} parent=31 // pred_check
        %p178 = pneg %p31
      $region34: #{tpu_custom_call.1} parent=31 // pred_check_branch
        %180 = sbr.rel (%p178) target = $region36
      $region35: #{tpu_custom_call.1} parent=31 // pred_region
        %s181 = smul.u32 32, %s11
        %p182 = scmp.lt.s32.totalorder %s181, 63
        %s183 = scalar_select %p182, %s181, 63
        %s184 = smul.addr %s183, 8
        %s185 = scalar_lea.vmem %s0, %s184
        %s186 = smul.u32 32, %s11
      $region36: #{tpu_custom_call.1} parent=31 // pred_fallthru
        _
    $region32: #{tpu_custom_call.1} parent=5 // pred_fallthru
      _
    %p187 = scmp.le.s32.totalorder 1, %s11
    %p188 = scmp.lt.s32.totalorder %s11, 3
    %p189 = pnand %p187, %p188
    %p190 = pneg %p189
    // Predicated region
    $region37: #{tpu_custom_call.1} parent=5 // pred_check
      _
    $region38: #{tpu_custom_call.1} parent=5 // pred_check_branch
      %192 = sbr.rel (%p189) target = $region40
    $region39: #{tpu_custom_call.1} parent=5 // pred_region
      %s193 = ssub.s32 %s11, 1
      %s194 = smul.u32 32, %s16
      %p195 = scmp.lt.s32.totalorder %s194, 63
      %s196 = scalar_select %p195, %s194, 63
      %s197 = smul.addr %s196, 8
      %s198 = scalar_lea.vmem %s0, %s197
      %p199 = pneg %p37
      %p200 = pneg %p34
      %p201 = pneg %p58
      %p202 = pneg %p55
      %p203 = pneg %p79
      %p204 = pneg %p76
      %p205 = pneg %p100
      %p206 = pneg %p97
      %p207 = pneg %p121
      %p208 = pneg %p118
      %p209 = pneg %p147
      %p210 = pneg %p144
      %s211 = smul.u32 32, %s16
      %p212 = scmp.lt.s32.totalorder %s211, 63
      %s213 = scalar_select %p212, %s211, 63
      %s214 = smul.addr %s213, 8
      %s215 = scalar_lea.vmem %s5, %s214
      %s216 = smul.u32 32, %s16
      %p217 = scmp.lt.s32.totalorder %s216, 63
      %s218 = scalar_select %p217, %s216, 63
      %s219 = smul.addr %s218, 8
      %s220 = scalar_lea.vmem %s0, %s219
      %s221 = smul.u32 32, %s16
      %s222 = smul.u32 32, %s16
      %p223 = scmp.lt.s32.totalorder %s222, 63
      %s224 = scalar_select %p223, %s222, 63
      %s225 = smul.addr %s224, 8
      %s226 = scalar_lea.vmem %s5, %s225
      %s227 = smul.u32 32, %s16
      %v228 = vld [vmem:[%s220] sm:$0xff]
      %v229 = vld [vmem:[%s220 + $0x8] sm:$0xff]
      %v230 = vld [vmem:[%s220 + $0x10] sm:$0xff]
      %v231 = vld [vmem:[%s220 + $0x18] sm:$0xff]
      %v232 = vld [vmem:[%s220 + $0x20] sm:$0xff]
      %v233 = vld [vmem:[%s220 + $0x28] sm:$0xff]
      %v234 = vld [vmem:[%s220 + $0x30] sm:$0xff]
      %v235 = vld [vmem:[%s220 + $0x38] sm:$0xff]
      %v236 = vld [vmem:[%s220 + $0x40] sm:$0xff]
      %v237 = vld [vmem:[%s220 + $0x48] sm:$0xff]
      %v238 = vld [vmem:[%s220 + $0x50] sm:$0xff]
      %v239 = vld [vmem:[%s220 + $0x58] sm:$0xff]
      %v240 = vld [vmem:[%s220 + $0x60] sm:$0xff]
      %v241 = vld [vmem:[%s220 + $0x68] sm:$0xff]
      %v242 = vld [vmem:[%s220 + $0x70] sm:$0xff]
      %v243 = vld [vmem:[%s220 + $0x78] sm:$0xff]
      %v244 = vld [vmem:[%s220 + $0x80] sm:$0xff]
      %v245 = vld [vmem:[%s220 + $0x88] sm:$0xff]
      %v246 = vld [vmem:[%s220 + $0x90] sm:$0xff]
      %v247 = vld [vmem:[%s220 + $0x98] sm:$0xff]
      %v248 = vld [vmem:[%s220 + $0xa0] sm:$0xff]
      %v249 = vld [vmem:[%s220 + $0xa8] sm:$0xff]
      %v250 = vld [vmem:[%s220 + $0xb0] sm:$0xff]
      %v251 = vld [vmem:[%s220 + $0xb8] sm:$0xff]
      %v252 = vld [vmem:[%s220 + $0xc0] sm:$0xff]
      %v253 = vld [vmem:[%s220 + $0xc8] sm:$0xff]
      %v254 = vld [vmem:[%s220 + $0xd0] sm:$0xff]
      %v255 = vld [vmem:[%s220 + $0xd8] sm:$0xff]
      %v256 = vld [vmem:[%s220 + $0xe0] sm:$0xff]
      %v257 = vld [vmem:[%s220 + $0xe8] sm:$0xff]
      %v258 = vld [vmem:[%s220 + $0xf0] sm:$0xff]
      %v259 = vld [vmem:[%s220 + $0xf8] sm:$0xff]
      %v260 = vld [vmem:[%s1] sm:$0xff]
      %v261 = vld [vmem:[%s1 + $0x8] sm:$0xff]
      %263 = vset.pattern.permute.xlu0 0
      %264 = vperm.xlu0 %263, %v228
      %v265 = vpop.permute.xlu0 %264
      %268 = vset.pattern.permute.xlu0 0
      %269 = vperm.xlu0 %268, %v229
      %v270 = vpop.permute.xlu0 %269
      %273 = vset.pattern.permute.xlu0 0
      %274 = vperm.xlu0 %273, %v230
      %v275 = vpop.permute.xlu0 %274
      %278 = vset.pattern.permute.xlu0 0
      %279 = vperm.xlu0 %278, %v231
      %v280 = vpop.permute.xlu0 %279
      %283 = vset.pattern.permute.xlu0 0
      %284 = vperm.xlu0 %283, %v232
      %v285 = vpop.permute.xlu0 %284
      %288 = vset.pattern.permute.xlu0 0
      %289 = vperm.xlu0 %288, %v233
      %v290 = vpop.permute.xlu0 %289
      %293 = vset.pattern.permute.xlu0 0
      %294 = vperm.xlu0 %293, %v234
      %v295 = vpop.permute.xlu0 %294
      %298 = vset.pattern.permute.xlu0 0
      %299 = vperm.xlu0 %298, %v235
      %v300 = vpop.permute.xlu0 %299
      %303 = vset.pattern.permute.xlu0 0
      %304 = vperm.xlu0 %303, %v236
      %v305 = vpop.permute.xlu0 %304
      %308 = vset.pattern.permute.xlu0 0
      %309 = vperm.xlu0 %308, %v237
      %v310 = vpop.permute.xlu0 %309
      %313 = vset.pattern.permute.xlu0 0
      %314 = vperm.xlu0 %313, %v238
      %v315 = vpop.permute.xlu0 %314
      %318 = vset.pattern.permute.xlu0 0
      %319 = vperm.xlu0 %318, %v239
      %v320 = vpop.permute.xlu0 %319
      %323 = vset.pattern.permute.xlu0 0
      %324 = vperm.xlu0 %323, %v240
      %v325 = vpop.permute.xlu0 %324
      %328 = vset.pattern.permute.xlu0 0
      %329 = vperm.xlu0 %328, %v241
      %v330 = vpop.permute.xlu0 %329
      %333 = vset.pattern.permute.xlu0 0
      %334 = vperm.xlu0 %333, %v242
      %v335 = vpop.permute.xlu0 %334
      %338 = vset.pattern.permute.xlu0 0
      %339 = vperm.xlu0 %338, %v243
      %v340 = vpop.permute.xlu0 %339
      %343 = vset.pattern.permute.xlu0 0
      %344 = vperm.xlu0 %343, %v244
      %v345 = vpop.permute.xlu0 %344
      %348 = vset.pattern.permute.xlu0 0
      %349 = vperm.xlu0 %348, %v245
      %v350 = vpop.permute.xlu0 %349
      %353 = vset.pattern.permute.xlu0 0
      %354 = vperm.xlu0 %353, %v246
      %v355 = vpop.permute.xlu0 %354
      %358 = vset.pattern.permute.xlu0 0
      %359 = vperm.xlu0 %358, %v247
      %v360 = vpop.permute.xlu0 %359
      %363 = vset.pattern.permute.xlu0 0
      %364 = vperm.xlu0 %363, %v248
      %v365 = vpop.permute.xlu0 %364
      %368 = vset.pattern.permute.xlu0 0
      %369 = vperm.xlu0 %368, %v249
      %v370 = vpop.permute.xlu0 %369
      %373 = vset.pattern.permute.xlu0 0
      %374 = vperm.xlu0 %373, %v250
      %v375 = vpop.permute.xlu0 %374
      %378 = vset.pattern.permute.xlu0 0
      %379 = vperm.xlu0 %378, %v251
      %v380 = vpop.permute.xlu0 %379
      %383 = vset.pattern.permute.xlu0 0
      %384 = vperm.xlu0 %383, %v252
      %v385 = vpop.permute.xlu0 %384
      %388 = vset.pattern.permute.xlu0 0
      %389 = vperm.xlu0 %388, %v253
      %v390 = vpop.permute.xlu0 %389
      %393 = vset.pattern.permute.xlu0 0
      %394 = vperm.xlu0 %393, %v254
      %v395 = vpop.permute.xlu0 %394
      %398 = vset.pattern.permute.xlu0 0
      %399 = vperm.xlu0 %398, %v255
      %v400 = vpop.permute.xlu0 %399
      %403 = vset.pattern.permute.xlu0 0
      %404 = vperm.xlu0 %403, %v256
      %v405 = vpop.permute.xlu0 %404
      %408 = vset.pattern.permute.xlu0 0
      %409 = vperm.xlu0 %408, %v257
      %v410 = vpop.permute.xlu0 %409
      %413 = vset.pattern.permute.xlu0 0
      %414 = vperm.xlu0 %413, %v258
      %v415 = vpop.permute.xlu0 %414
      %418 = vset.pattern.permute.xlu0 0
      %419 = vperm.xlu0 %418, %v259
      %v420 = vpop.permute.xlu0 %419
      %v422 = vlaneseq
      %v423 = vshrl.u32 %v422, 7
      %v424 = vsub.s32 0, %v423
      %v425 = vrot.slane %v260, %v424
      %v426 = vlaneseq
      %v427 = vshrl.u32 %v426, 7
      %v428 = vsub.s32 0, %v427
      %v429 = vrot.slane %v261, %v428
      %v430 = vmul.f32 %v265, %v425
      %v431 = vmul.f32 %v265, %v429
      %v432 = vmul.f32 %v270, %v425
      %v433 = vmul.f32 %v270, %v429
      %v434 = vmul.f32 %v275, %v425
      %v435 = vmul.f32 %v275, %v429
      %v436 = vmul.f32 %v280, %v425
      %v437 = vmul.f32 %v280, %v429
      %v438 = vmul.f32 %v285, %v425
      %v439 = vmul.f32 %v285, %v429
      %v440 = vmul.f32 %v290, %v425
      %v441 = vmul.f32 %v290, %v429
      %v442 = vmul.f32 %v295, %v425
      %v443 = vmul.f32 %v295, %v429
      %v444 = vmul.f32 %v300, %v425
      %v445 = vmul.f32 %v300, %v429
      %v446 = vmul.f32 %v305, %v425
      %v447 = vmul.f32 %v305, %v429
      %v448 = vmul.f32 %v310, %v425
      %v449 = vmul.f32 %v310, %v429
      %v450 = vmul.f32 %v315, %v425
      %v451 = vmul.f32 %v315, %v429
      %v452 = vmul.f32 %v320, %v425
      %v453 = vmul.f32 %v320, %v429
      %v454 = vmul.f32 %v325, %v425
      %v455 = vmul.f32 %v325, %v429
      %v456 = vmul.f32 %v330, %v425
      %v457 = vmul.f32 %v330, %v429
      %v458 = vmul.f32 %v335, %v425
      %v459 = vmul.f32 %v335, %v429
      %v460 = vmul.f32 %v340, %v425
      %v461 = vmul.f32 %v340, %v429
      %v462 = vmul.f32 %v345, %v425
      %v463 = vmul.f32 %v345, %v429
      %v464 = vmul.f32 %v350, %v425
      %v465 = vmul.f32 %v350, %v429
      %v466 = vmul.f32 %v355, %v425
      %v467 = vmul.f32 %v355, %v429
      %v468 = vmul.f32 %v360, %v425
      %v469 = vmul.f32 %v360, %v429
      %v470 = vmul.f32 %v365, %v425
      %v471 = vmul.f32 %v365, %v429
      %v472 = vmul.f32 %v370, %v425
      %v473 = vmul.f32 %v370, %v429
      %v474 = vmul.f32 %v375, %v425
      %v475 = vmul.f32 %v375, %v429
      %v476 = vmul.f32 %v380, %v425
      %v477 = vmul.f32 %v380, %v429
      %v478 = vmul.f32 %v385, %v425
      %v479 = vmul.f32 %v385, %v429
      %v480 = vmul.f32 %v390, %v425
      %v481 = vmul.f32 %v390, %v429
      %v482 = vmul.f32 %v395, %v425
      %v483 = vmul.f32 %v395, %v429
      %v484 = vmul.f32 %v400, %v425
      %v485 = vmul.f32 %v400, %v429
      %v486 = vmul.f32 %v405, %v425
      %v487 = vmul.f32 %v405, %v429
      %v488 = vmul.f32 %v410, %v425
      %v489 = vmul.f32 %v410, %v429
      %v490 = vmul.f32 %v415, %v425
      %v491 = vmul.f32 %v415, %v429
      %v492 = vmul.f32 %v420, %v425
      %v493 = vmul.f32 %v420, %v429
      %v494 = vld [vmem:[%s2] sm:$0x3]
      %v496 = vlaneseq
      %v497 = vshrl.u32 %v496, 7
      %v498 = vsub.s32 0, %v497
      %v499 = vrot.slane %v494, %v498
      %v500 = vlaneseq
      %v501 = vshrl.u32 %v500, 7
      %v502 = vsub.s32 1, %v501
      %v503 = vrot.slane %v494, %v502
      %v506 = vadd.f32 %v430, %v499
      %v507 = vadd.f32 %v431, %v503
      %v508 = vadd.f32 %v432, %v499
      %v509 = vadd.f32 %v433, %v503
      %v510 = vadd.f32 %v434, %v499
      %v511 = vadd.f32 %v435, %v503
      %v512 = vadd.f32 %v436, %v499
      %v513 = vadd.f32 %v437, %v503
      %v514 = vadd.f32 %v438, %v499
      %v515 = vadd.f32 %v439, %v503
      %v516 = vadd.f32 %v440, %v499
      %v517 = vadd.f32 %v441, %v503
      %v518 = vadd.f32 %v442, %v499
      %v519 = vadd.f32 %v443, %v503
      %v520 = vadd.f32 %v444, %v499
      %v521 = vadd.f32 %v445, %v503
      %v522 = vadd.f32 %v446, %v499
      %v523 = vadd.f32 %v447, %v503
      %v524 = vadd.f32 %v448, %v499
      %v525 = vadd.f32 %v449, %v503
      %v526 = vadd.f32 %v450, %v499
      %v527 = vadd.f32 %v451, %v503
      %v528 = vadd.f32 %v452, %v499
      %v529 = vadd.f32 %v453, %v503
      %v530 = vadd.f32 %v454, %v499
      %v531 = vadd.f32 %v455, %v503
      %v532 = vadd.f32 %v456, %v499
      %v533 = vadd.f32 %v457, %v503
      %v534 = vadd.f32 %v458, %v499
      %v535 = vadd.f32 %v459, %v503
      %v536 = vadd.f32 %v460, %v499
      %v537 = vadd.f32 %v461, %v503
      %v538 = vadd.f32 %v462, %v499
      %v539 = vadd.f32 %v463, %v503
      %v540 = vadd.f32 %v464, %v499
      %v541 = vadd.f32 %v465, %v503
      %v542 = vadd.f32 %v466, %v499
      %v543 = vadd.f32 %v467, %v503
      %v544 = vadd.f32 %v468, %v499
      %v545 = vadd.f32 %v469, %v503
      %v546 = vadd.f32 %v470, %v499
      %v547 = vadd.f32 %v471, %v503
      %v548 = vadd.f32 %v472, %v499
      %v549 = vadd.f32 %v473, %v503
      %v550 = vadd.f32 %v474, %v499
      %v551 = vadd.f32 %v475, %v503
      %v552 = vadd.f32 %v476, %v499
      %v553 = vadd.f32 %v477, %v503
      %v554 = vadd.f32 %v478, %v499
      %v555 = vadd.f32 %v479, %v503
      %v556 = vadd.f32 %v480, %v499
      %v557 = vadd.f32 %v481, %v503
      %v558 = vadd.f32 %v482, %v499
      %v559 = vadd.f32 %v483, %v503
      %v560 = vadd.f32 %v484, %v499
      %v561 = vadd.f32 %v485, %v503
      %v562 = vadd.f32 %v486, %v499
      %v563 = vadd.f32 %v487, %v503
      %v564 = vadd.f32 %v488, %v499
      %v565 = vadd.f32 %v489, %v503
      %v566 = vadd.f32 %v490, %v499
      %v567 = vadd.f32 %v491, %v503
      %v568 = vadd.f32 %v492, %v499
      %v569 = vadd.f32 %v493, %v503
      %570 = vset.pattern.permute.xlu0 1
      %571 = vperm.xlu0 %570, %v228
      %v572 = vpop.permute.xlu0 %571
      %574 = vset.pattern.permute.xlu0 1
      %575 = vperm.xlu0 %574, %v229
      %v576 = vpop.permute.xlu0 %575
      %578 = vset.pattern.permute.xlu0 1
      %579 = vperm.xlu0 %578, %v230
      %v580 = vpop.permute.xlu0 %579
      %582 = vset.pattern.permute.xlu0 1
      %583 = vperm.xlu0 %582, %v231
      %v584 = vpop.permute.xlu0 %583
      %586 = vset.pattern.permute.xlu0 1
      %587 = vperm.xlu0 %586, %v232
      %v588 = vpop.permute.xlu0 %587
      %590 = vset.pattern.permute.xlu0 1
      %591 = vperm.xlu0 %590, %v233
      %v592 = vpop.permute.xlu0 %591
      %594 = vset.pattern.permute.xlu0 1
      %595 = vperm.xlu0 %594, %v234
      %v596 = vpop.permute.xlu0 %595
      %598 = vset.pattern.permute.xlu0 1
      %599 = vperm.xlu0 %598, %v235
      %v600 = vpop.permute.xlu0 %599
      %602 = vset.pattern.permute.xlu0 1
      %603 = vperm.xlu0 %602, %v236
      %v604 = vpop.permute.xlu0 %603
      %606 = vset.pattern.permute.xlu0 1
      %607 = vperm.xlu0 %606, %v237
      %v608 = vpop.permute.xlu0 %607
      %610 = vset.pattern.permute.xlu0 1
      %611 = vperm.xlu0 %610, %v238
      %v612 = vpop.permute.xlu0 %611
      %614 = vset.pattern.permute.xlu0 1
      %615 = vperm.xlu0 %614, %v239
      %v616 = vpop.permute.xlu0 %615
      %618 = vset.pattern.permute.xlu0 1
      %619 = vperm.xlu0 %618, %v240
      %v620 = vpop.permute.xlu0 %619
      %622 = vset.pattern.permute.xlu0 1
      %623 = vperm.xlu0 %622, %v241
      %v624 = vpop.permute.xlu0 %623
      %626 = vset.pattern.permute.xlu0 1
      %627 = vperm.xlu0 %626, %v242
      %v628 = vpop.permute.xlu0 %627
      %630 = vset.pattern.permute.xlu0 1
      %631 = vperm.xlu0 %630, %v243
      %v632 = vpop.permute.xlu0 %631
      %634 = vset.pattern.permute.xlu0 1
      %635 = vperm.xlu0 %634, %v244
      %v636 = vpop.permute.xlu0 %635
      %638 = vset.pattern.permute.xlu0 1
      %639 = vperm.xlu0 %638, %v245
      %v640 = vpop.permute.xlu0 %639
      %642 = vset.pattern.permute.xlu0 1
      %643 = vperm.xlu0 %642, %v246
      %v644 = vpop.permute.xlu0 %643
      %646 = vset.pattern.permute.xlu0 1
      %647 = vperm.xlu0 %646, %v247
      %v648 = vpop.permute.xlu0 %647
      %650 = vset.pattern.permute.xlu0 1
      %651 = vperm.xlu0 %650, %v248
      %v652 = vpop.permute.xlu0 %651
      %654 = vset.pattern.permute.xlu0 1
      %655 = vperm.xlu0 %654, %v249
      %v656 = vpop.permute.xlu0 %655
      %658 = vset.pattern.permute.xlu0 1
      %659 = vperm.xlu0 %658, %v250
      %v660 = vpop.permute.xlu0 %659
      %662 = vset.pattern.permute.xlu0 1
      %663 = vperm.xlu0 %662, %v251
      %v664 = vpop.permute.xlu0 %663
      %666 = vset.pattern.permute.xlu0 1
      %667 = vperm.xlu0 %666, %v252
      %v668 = vpop.permute.xlu0 %667
      %670 = vset.pattern.permute.xlu0 1
      %671 = vperm.xlu0 %670, %v253
      %v672 = vpop.permute.xlu0 %671
      %674 = vset.pattern.permute.xlu0 1
      %675 = vperm.xlu0 %674, %v254
      %v676 = vpop.permute.xlu0 %675
      %678 = vset.pattern.permute.xlu0 1
      %679 = vperm.xlu0 %678, %v255
      %v680 = vpop.permute.xlu0 %679
      %682 = vset.pattern.permute.xlu0 1
      %683 = vperm.xlu0 %682, %v256
      %v684 = vpop.permute.xlu0 %683
      %686 = vset.pattern.permute.xlu0 1
      %687 = vperm.xlu0 %686, %v257
      %v688 = vpop.permute.xlu0 %687
      %690 = vset.pattern.permute.xlu0 1
      %691 = vperm.xlu0 %690, %v258
      %v692 = vpop.permute.xlu0 %691
      %694 = vset.pattern.permute.xlu0 1
      %695 = vperm.xlu0 %694, %v259
      %v696 = vpop.permute.xlu0 %695
      %v698 = vlaneseq
      %v699 = vshrl.u32 %v698, 7
      %v700 = vsub.s32 1, %v699
      %v701 = vrot.slane %v260, %v700
      %v702 = vlaneseq
      %v703 = vshrl.u32 %v702, 7
      %v704 = vsub.s32 1, %v703
      %v705 = vrot.slane %v261, %v704
      %v706 = vmul.f32 %v572, %v701
      %v707 = vmul.f32 %v572, %v705
      %v708 = vmul.f32 %v576, %v701
      %v709 = vmul.f32 %v576, %v705
      %v710 = vmul.f32 %v580, %v701
      %v711 = vmul.f32 %v580, %v705
      %v712 = vmul.f32 %v584, %v701
      %v713 = vmul.f32 %v584, %v705
      %v714 = vmul.f32 %v588, %v701
      %v715 = vmul.f32 %v588, %v705
      %v716 = vmul.f32 %v592, %v701
      %v717 = vmul.f32 %v592, %v705
      %v718 = vmul.f32 %v596, %v701
      %v719 = vmul.f32 %v596, %v705
      %v720 = vmul.f32 %v600, %v701
      %v721 = vmul.f32 %v600, %v705
      %v722 = vmul.f32 %v604, %v701
      %v723 = vmul.f32 %v604, %v705
      %v724 = vmul.f32 %v608, %v701
      %v725 = vmul.f32 %v608, %v705
      %v726 = vmul.f32 %v612, %v701
      %v727 = vmul.f32 %v612, %v705
      %v728 = vmul.f32 %v616, %v701
      %v729 = vmul.f32 %v616, %v705
      %v730 = vmul.f32 %v620, %v701
      %v731 = vmul.f32 %v620, %v705
      %v732 = vmul.f32 %v624, %v701
      %v733 = vmul.f32 %v624, %v705
      %v734 = vmul.f32 %v628, %v701
      %v735 = vmul.f32 %v628, %v705
      %v736 = vmul.f32 %v632, %v701
      %v737 = vmul.f32 %v632, %v705
      %v738 = vmul.f32 %v636, %v701
      %v739 = vmul.f32 %v636, %v705
      %v740 = vmul.f32 %v640, %v701
      %v741 = vmul.f32 %v640, %v705
      %v742 = vmul.f32 %v644, %v701
      %v743 = vmul.f32 %v644, %v705
      %v744 = vmul.f32 %v648, %v701
      %v745 = vmul.f32 %v648, %v705
      %v746 = vmul.f32 %v652, %v701
      %v747 = vmul.f32 %v652, %v705
      %v748 = vmul.f32 %v656, %v701
      %v749 = vmul.f32 %v656, %v705
      %v750 = vmul.f32 %v660, %v701
      %v751 = vmul.f32 %v660, %v705
      %v752 = vmul.f32 %v664, %v701
      %v753 = vmul.f32 %v664, %v705
      %v754 = vmul.f32 %v668, %v701
      %v755 = vmul.f32 %v668, %v705
      %v756 = vmul.f32 %v672, %v701
      %v757 = vmul.f32 %v672, %v705
      %v758 = vmul.f32 %v676, %v701
      %v759 = vmul.f32 %v676, %v705
      %v760 = vmul.f32 %v680, %v701
      %v761 = vmul.f32 %v680, %v705
      %v762 = vmul.f32 %v684, %v701
      %v763 = vmul.f32 %v684, %v705
      %v764 = vmul.f32 %v688, %v701
      %v765 = vmul.f32 %v688, %v705
      %v766 = vmul.f32 %v692, %v701
      %v767 = vmul.f32 %v692, %v705
      %v768 = vmul.f32 %v696, %v701
      %v769 = vmul.f32 %v696, %v705
      %v770 = vadd.f32 %v506, %v706
      %v771 = vadd.f32 %v507, %v707
      %v772 = vadd.f32 %v508, %v708
      %v773 = vadd.f32 %v509, %v709
      %v774 = vadd.f32 %v510, %v710
      %v775 = vadd.f32 %v511, %v711
      %v776 = vadd.f32 %v512, %v712
      %v777 = vadd.f32 %v513, %v713
      %v778 = vadd.f32 %v514, %v714
      %v779 = vadd.f32 %v515, %v715
      %v780 = vadd.f32 %v516, %v716
      %v781 = vadd.f32 %v517, %v717
      %v782 = vadd.f32 %v518, %v718
      %v783 = vadd.f32 %v519, %v719
      %v784 = vadd.f32 %v520, %v720
      %v785 = vadd.f32 %v521, %v721
      %v786 = vadd.f32 %v522, %v722
      %v787 = vadd.f32 %v523, %v723
      %v788 = vadd.f32 %v524, %v724
      %v789 = vadd.f32 %v525, %v725
      %v790 = vadd.f32 %v526, %v726
      %v791 = vadd.f32 %v527, %v727
      %v792 = vadd.f32 %v528, %v728
      %v793 = vadd.f32 %v529, %v729
      %v794 = vadd.f32 %v530, %v730
      %v795 = vadd.f32 %v531, %v731
      %v796 = vadd.f32 %v532, %v732
      %v797 = vadd.f32 %v533, %v733
      %v798 = vadd.f32 %v534, %v734
      %v799 = vadd.f32 %v535, %v735
      %v800 = vadd.f32 %v536, %v736
      %v801 = vadd.f32 %v537, %v737
      %v802 = vadd.f32 %v538, %v738
      %v803 = vadd.f32 %v539, %v739
      %v804 = vadd.f32 %v540, %v740
      %v805 = vadd.f32 %v541, %v741
      %v806 = vadd.f32 %v542, %v742
      %v807 = vadd.f32 %v543, %v743
      %v808 = vadd.f32 %v544, %v744
      %v809 = vadd.f32 %v545, %v745
      %v810 = vadd.f32 %v546, %v746
      %v811 = vadd.f32 %v547, %v747
      %v812 = vadd.f32 %v548, %v748
      %v813 = vadd.f32 %v549, %v749
      %v814 = vadd.f32 %v550, %v750
      %v815 = vadd.f32 %v551, %v751
      %v816 = vadd.f32 %v552, %v752
      %v817 = vadd.f32 %v553, %v753
      %v818 = vadd.f32 %v554, %v754
      %v819 = vadd.f32 %v555, %v755
      %v820 = vadd.f32 %v556, %v756
      %v821 = vadd.f32 %v557, %v757
      %v822 = vadd.f32 %v558, %v758
      %v823 = vadd.f32 %v559, %v759
      %v824 = vadd.f32 %v560, %v760
      %v825 = vadd.f32 %v561, %v761
      %v826 = vadd.f32 %v562, %v762
      %v827 = vadd.f32 %v563, %v763
      %v828 = vadd.f32 %v564, %v764
      %v829 = vadd.f32 %v565, %v765
      %v830 = vadd.f32 %v566, %v766
      %v831 = vadd.f32 %v567, %v767
      %v832 = vadd.f32 %v568, %v768
      %v833 = vadd.f32 %v569, %v769
      %834 = vset.pattern.permute.xlu0 2
      %835 = vperm.xlu0 %834, %v228
      %v836 = vpop.permute.xlu0 %835
      %838 = vset.pattern.permute.xlu0 2
      %839 = vperm.xlu0 %838, %v229
      %v840 = vpop.permute.xlu0 %839
      %842 = vset.pattern.permute.xlu0 2
      %843 = vperm.xlu0 %842, %v230
      %v844 = vpop.permute.xlu0 %843
      %846 = vset.pattern.permute.xlu0 2
      %847 = vperm.xlu0 %846, %v231
      %v848 = vpop.permute.xlu0 %847
      %850 = vset.pattern.permute.xlu0 2
      %851 = vperm.xlu0 %850, %v232
      %v852 = vpop.permute.xlu0 %851
      %854 = vset.pattern.permute.xlu0 2
      %855 = vperm.xlu0 %854, %v233
      %v856 = vpop.permute.xlu0 %855
      %858 = vset.pattern.permute.xlu0 2
      %859 = vperm.xlu0 %858, %v234
      %v860 = vpop.permute.xlu0 %859
      %862 = vset.pattern.permute.xlu0 2
      %863 = vperm.xlu0 %862, %v235
      %v864 = vpop.permute.xlu0 %863
      %866 = vset.pattern.permute.xlu0 2
      %867 = vperm.xlu0 %866, %v236
      %v868 = vpop.permute.xlu0 %867
      %870 = vset.pattern.permute.xlu0 2
      %871 = vperm.xlu0 %870, %v237
      %v872 = vpop.permute.xlu0 %871
      %874 = vset.pattern.permute.xlu0 2
      %875 = vperm.xlu0 %874, %v238
      %v876 = vpop.permute.xlu0 %875
      %878 = vset.pattern.permute.xlu0 2
      %879 = vperm.xlu0 %878, %v239
      %v880 = vpop.permute.xlu0 %879
      %882 = vset.pattern.permute.xlu0 2
      %883 = vperm.xlu0 %882, %v240
      %v884 = vpop.permute.xlu0 %883
      %886 = vset.pattern.permute.xlu0 2
      %887 = vperm.xlu0 %886, %v241
      %v888 = vpop.permute.xlu0 %887
      %890 = vset.pattern.permute.xlu0 2
      %891 = vperm.xlu0 %890, %v242
      %v892 = vpop.permute.xlu0 %891
      %894 = vset.pattern.permute.xlu0 2
      %895 = vperm.xlu0 %894, %v243
      %v896 = vpop.permute.xlu0 %895
      %898 = vset.pattern.permute.xlu0 2
      %899 = vperm.xlu0 %898, %v244
      %v900 = vpop.permute.xlu0 %899
      %902 = vset.pattern.permute.xlu0 2
      %903 = vperm.xlu0 %902, %v245
      %v904 = vpop.permute.xlu0 %903
      %906 = vset.pattern.permute.xlu0 2
      %907 = vperm.xlu0 %906, %v246
      %v908 = vpop.permute.xlu0 %907
      %910 = vset.pattern.permute.xlu0 2
      %911 = vperm.xlu0 %910, %v247
      %v912 = vpop.permute.xlu0 %911
      %914 = vset.pattern.permute.xlu0 2
      %915 = vperm.xlu0 %914, %v248
      %v916 = vpop.permute.xlu0 %915
      %918 = vset.pattern.permute.xlu0 2
      %919 = vperm.xlu0 %918, %v249
      %v920 = vpop.permute.xlu0 %919
      %922 = vset.pattern.permute.xlu0 2
      %923 = vperm.xlu0 %922, %v250
      %v924 = vpop.permute.xlu0 %923
      %926 = vset.pattern.permute.xlu0 2
      %927 = vperm.xlu0 %926, %v251
      %v928 = vpop.permute.xlu0 %927
      %930 = vset.pattern.permute.xlu0 2
      %931 = vperm.xlu0 %930, %v252
      %v932 = vpop.permute.xlu0 %931
      %934 = vset.pattern.permute.xlu0 2
      %935 = vperm.xlu0 %934, %v253
      %v936 = vpop.permute.xlu0 %935
      %938 = vset.pattern.permute.xlu0 2
      %939 = vperm.xlu0 %938, %v254
      %v940 = vpop.permute.xlu0 %939
      %942 = vset.pattern.permute.xlu0 2
      %943 = vperm.xlu0 %942, %v255
      %v944 = vpop.permute.xlu0 %943
      %946 = vset.pattern.permute.xlu0 2
      %947 = vperm.xlu0 %946, %v256
      %v948 = vpop.permute.xlu0 %947
      %950 = vset.pattern.permute.xlu0 2
      %951 = vperm.xlu0 %950, %v257
      %v952 = vpop.permute.xlu0 %951
      %954 = vset.pattern.permute.xlu0 2
      %955 = vperm.xlu0 %954, %v258
      %v956 = vpop.permute.xlu0 %955
      %958 = vset.pattern.permute.xlu0 2
      %959 = vperm.xlu0 %958, %v259
      %v960 = vpop.permute.xlu0 %959
      %v962 = vlaneseq
      %v963 = vshrl.u32 %v962, 7
      %v964 = vsub.s32 2, %v963
      %v965 = vrot.slane %v260, %v964
      %v966 = vlaneseq
      %v967 = vshrl.u32 %v966, 7
      %v968 = vsub.s32 2, %v967
      %v969 = vrot.slane %v261, %v968
      %v970 = vmul.f32 %v836, %v965
      %v971 = vmul.f32 %v836, %v969
      %v972 = vmul.f32 %v840, %v965
      %v973 = vmul.f32 %v840, %v969
      %v974 = vmul.f32 %v844, %v965
      %v975 = vmul.f32 %v844, %v969
      %v976 = vmul.f32 %v848, %v965
      %v977 = vmul.f32 %v848, %v969
      %v978 = vmul.f32 %v852, %v965
      %v979 = vmul.f32 %v852, %v969
      %v980 = vmul.f32 %v856, %v965
      %v981 = vmul.f32 %v856, %v969
      %v982 = vmul.f32 %v860, %v965
      %v983 = vmul.f32 %v860, %v969
      %v984 = vmul.f32 %v864, %v965
      %v985 = vmul.f32 %v864, %v969
      %v986 = vmul.f32 %v868, %v965
      %v987 = vmul.f32 %v868, %v969
      %v988 = vmul.f32 %v872, %v965
      %v989 = vmul.f32 %v872, %v969
      %v990 = vmul.f32 %v876, %v965
      %v991 = vmul.f32 %v876, %v969
      %v992 = vmul.f32 %v880, %v965
      %v993 = vmul.f32 %v880, %v969
      %v994 = vmul.f32 %v884, %v965
      %v995 = vmul.f32 %v884, %v969
      %v996 = vmul.f32 %v888, %v965
      %v997 = vmul.f32 %v888, %v969
      %v998 = vmul.f32 %v892, %v965
      %v999 = vmul.f32 %v892, %v969
      %v1000 = vmul.f32 %v896, %v965
      %v1001 = vmul.f32 %v896, %v969
      %v1002 = vmul.f32 %v900, %v965
      %v1003 = vmul.f32 %v900, %v969
      %v1004 = vmul.f32 %v904, %v965
      %v1005 = vmul.f32 %v904, %v969
      %v1006 = vmul.f32 %v908, %v965
      %v1007 = vmul.f32 %v908, %v969
      %v1008 = vmul.f32 %v912, %v965
      %v1009 = vmul.f32 %v912, %v969
      %v1010 = vmul.f32 %v916, %v965
      %v1011 = vmul.f32 %v916, %v969
      %v1012 = vmul.f32 %v920, %v965
      %v1013 = vmul.f32 %v920, %v969
      %v1014 = vmul.f32 %v924, %v965
      %v1015 = vmul.f32 %v924, %v969
      %v1016 = vmul.f32 %v928, %v965
      %v1017 = vmul.f32 %v928, %v969
      %v1018 = vmul.f32 %v932, %v965
      %v1019 = vmul.f32 %v932, %v969
      %v1020 = vmul.f32 %v936, %v965
      %v1021 = vmul.f32 %v936, %v969
      %v1022 = vmul.f32 %v940, %v965
      %v1023 = vmul.f32 %v940, %v969
      %v1024 = vmul.f32 %v944, %v965
      %v1025 = vmul.f32 %v944, %v969
      %v1026 = vmul.f32 %v948, %v965
      %v1027 = vmul.f32 %v948, %v969
      %v1028 = vmul.f32 %v952, %v965
      %v1029 = vmul.f32 %v952, %v969
      %v1030 = vmul.f32 %v956, %v965
      %v1031 = vmul.f32 %v956, %v969
      %v1032 = vmul.f32 %v960, %v965
      %v1033 = vmul.f32 %v960, %v969
      %v1034 = vadd.f32 %v770, %v970
      %v1035 = vadd.f32 %v771, %v971
      %v1036 = vadd.f32 %v772, %v972
      %v1037 = vadd.f32 %v773, %v973
      %v1038 = vadd.f32 %v774, %v974
      %v1039 = vadd.f32 %v775, %v975
      %v1040 = vadd.f32 %v776, %v976
      %v1041 = vadd.f32 %v777, %v977
      %v1042 = vadd.f32 %v778, %v978
      %v1043 = vadd.f32 %v779, %v979
      %v1044 = vadd.f32 %v780, %v980
      %v1045 = vadd.f32 %v781, %v981
      %v1046 = vadd.f32 %v782, %v982
      %v1047 = vadd.f32 %v783, %v983
      %v1048 = vadd.f32 %v784, %v984
      %v1049 = vadd.f32 %v785, %v985
      %v1050 = vadd.f32 %v786, %v986
      %v1051 = vadd.f32 %v787, %v987
      %v1052 = vadd.f32 %v788, %v988
      %v1053 = vadd.f32 %v789, %v989
      %v1054 = vadd.f32 %v790, %v990
      %v1055 = vadd.f32 %v791, %v991
      %v1056 = vadd.f32 %v792, %v992
      %v1057 = vadd.f32 %v793, %v993
      %v1058 = vadd.f32 %v794, %v994
      %v1059 = vadd.f32 %v795, %v995
      %v1060 = vadd.f32 %v796, %v996
      %v1061 = vadd.f32 %v797, %v997
      %v1062 = vadd.f32 %v798, %v998
      %v1063 = vadd.f32 %v799, %v999
      %v1064 = vadd.f32 %v800, %v1000
      %v1065 = vadd.f32 %v801, %v1001
      %v1066 = vadd.f32 %v802, %v1002
      %v1067 = vadd.f32 %v803, %v1003
      %v1068 = vadd.f32 %v804, %v1004
      %v1069 = vadd.f32 %v805, %v1005
      %v1070 = vadd.f32 %v806, %v1006
      %v1071 = vadd.f32 %v807, %v1007
      %v1072 = vadd.f32 %v808, %v1008
      %v1073 = vadd.f32 %v809, %v1009
      %v1074 = vadd.f32 %v810, %v1010
      %v1075 = vadd.f32 %v811, %v1011
      %v1076 = vadd.f32 %v812, %v1012
      %v1077 = vadd.f32 %v813, %v1013
      %v1078 = vadd.f32 %v814, %v1014
      %v1079 = vadd.f32 %v815, %v1015
      %v1080 = vadd.f32 %v816, %v1016
      %v1081 = vadd.f32 %v817, %v1017
      %v1082 = vadd.f32 %v818, %v1018
      %v1083 = vadd.f32 %v819, %v1019
      %v1084 = vadd.f32 %v820, %v1020
      %v1085 = vadd.f32 %v821, %v1021
      %v1086 = vadd.f32 %v822, %v1022
      %v1087 = vadd.f32 %v823, %v1023
      %v1088 = vadd.f32 %v824, %v1024
      %v1089 = vadd.f32 %v825, %v1025
      %v1090 = vadd.f32 %v826, %v1026
      %v1091 = vadd.f32 %v827, %v1027
      %v1092 = vadd.f32 %v828, %v1028
      %v1093 = vadd.f32 %v829, %v1029
      %v1094 = vadd.f32 %v830, %v1030
      %v1095 = vadd.f32 %v831, %v1031
      %v1096 = vadd.f32 %v832, %v1032
      %v1097 = vadd.f32 %v833, %v1033
      %1098 = vset.pattern.permute.xlu0 3
      %1099 = vperm.xlu0 %1098, %v228
      %v1100 = vpop.permute.xlu0 %1099
      %1102 = vset.pattern.permute.xlu0 3
      %1103 = vperm.xlu0 %1102, %v229
      %v1104 = vpop.permute.xlu0 %1103
      %1106 = vset.pattern.permute.xlu0 3
      %1107 = vperm.xlu0 %1106, %v230
      %v1108 = vpop.permute.xlu0 %1107
      %1110 = vset.pattern.permute.xlu0 3
      %1111 = vperm.xlu0 %1110, %v231
      %v1112 = vpop.permute.xlu0 %1111
      %1114 = vset.pattern.permute.xlu0 3
      %1115 = vperm.xlu0 %1114, %v232
      %v1116 = vpop.permute.xlu0 %1115
      %1118 = vset.pattern.permute.xlu0 3
      %1119 = vperm.xlu0 %1118, %v233
      %v1120 = vpop.permute.xlu0 %1119
      %1122 = vset.pattern.permute.xlu0 3
      %1123 = vperm.xlu0 %1122, %v234
      %v1124 = vpop.permute.xlu0 %1123
      %1126 = vset.pattern.permute.xlu0 3
      %1127 = vperm.xlu0 %1126, %v235
      %v1128 = vpop.permute.xlu0 %1127
      %1130 = vset.pattern.permute.xlu0 3
      %1131 = vperm.xlu0 %1130, %v236
      %v1132 = vpop.permute.xlu0 %1131
      %1134 = vset.pattern.permute.xlu0 3
      %1135 = vperm.xlu0 %1134, %v237
      %v1136 = vpop.permute.xlu0 %1135
      %1138 = vset.pattern.permute.xlu0 3
      %1139 = vperm.xlu0 %1138, %v238
      %v1140 = vpop.permute.xlu0 %1139
      %1142 = vset.pattern.permute.xlu0 3
      %1143 = vperm.xlu0 %1142, %v239
      %v1144 = vpop.permute.xlu0 %1143
      %1146 = vset.pattern.permute.xlu0 3
      %1147 = vperm.xlu0 %1146, %v240
      %v1148 = vpop.permute.xlu0 %1147
      %1150 = vset.pattern.permute.xlu0 3
      %1151 = vperm.xlu0 %1150, %v241
      %v1152 = vpop.permute.xlu0 %1151
      %1154 = vset.pattern.permute.xlu0 3
      %1155 = vperm.xlu0 %1154, %v242
      %v1156 = vpop.permute.xlu0 %1155
      %1158 = vset.pattern.permute.xlu0 3
      %1159 = vperm.xlu0 %1158, %v243
      %v1160 = vpop.permute.xlu0 %1159
      %1162 = vset.pattern.permute.xlu0 3
      %1163 = vperm.xlu0 %1162, %v244
      %v1164 = vpop.permute.xlu0 %1163
      %1166 = vset.pattern.permute.xlu0 3
      %1167 = vperm.xlu0 %1166, %v245
      %v1168 = vpop.permute.xlu0 %1167
      %1170 = vset.pattern.permute.xlu0 3
      %1171 = vperm.xlu0 %1170, %v246
      %v1172 = vpop.permute.xlu0 %1171
      %1174 = vset.pattern.permute.xlu0 3
      %1175 = vperm.xlu0 %1174, %v247
      %v1176 = vpop.permute.xlu0 %1175
      %1178 = vset.pattern.permute.xlu0 3
      %1179 = vperm.xlu0 %1178, %v248
      %v1180 = vpop.permute.xlu0 %1179
      %1182 = vset.pattern.permute.xlu0 3
      %1183 = vperm.xlu0 %1182, %v249
      %v1184 = vpop.permute.xlu0 %1183
      %1186 = vset.pattern.permute.xlu0 3
      %1187 = vperm.xlu0 %1186, %v250
      %v1188 = vpop.permute.xlu0 %1187
      %1190 = vset.pattern.permute.xlu0 3
      %1191 = vperm.xlu0 %1190, %v251
      %v1192 = vpop.permute.xlu0 %1191
      %1194 = vset.pattern.permute.xlu0 3
      %1195 = vperm.xlu0 %1194, %v252
      %v1196 = vpop.permute.xlu0 %1195
      %1198 = vset.pattern.permute.xlu0 3
      %1199 = vperm.xlu0 %1198, %v253
      %v1200 = vpop.permute.xlu0 %1199
      %1202 = vset.pattern.permute.xlu0 3
      %1203 = vperm.xlu0 %1202, %v254
      %v1204 = vpop.permute.xlu0 %1203
      %1206 = vset.pattern.permute.xlu0 3
      %1207 = vperm.xlu0 %1206, %v255
      %v1208 = vpop.permute.xlu0 %1207
      %1210 = vset.pattern.permute.xlu0 3
      %1211 = vperm.xlu0 %1210, %v256
      %v1212 = vpop.permute.xlu0 %1211
      %1214 = vset.pattern.permute.xlu0 3
      %1215 = vperm.xlu0 %1214, %v257
      %v1216 = vpop.permute.xlu0 %1215
      %1218 = vset.pattern.permute.xlu0 3
      %1219 = vperm.xlu0 %1218, %v258
      %v1220 = vpop.permute.xlu0 %1219
      %1222 = vset.pattern.permute.xlu0 3
      %1223 = vperm.xlu0 %1222, %v259
      %v1224 = vpop.permute.xlu0 %1223
      %v1226 = vlaneseq
      %v1227 = vshrl.u32 %v1226, 7
      %v1228 = vsub.s32 3, %v1227
      %v1229 = vrot.slane %v260, %v1228
      %v1230 = vlaneseq
      %v1231 = vshrl.u32 %v1230, 7
      %v1232 = vsub.s32 3, %v1231
      %v1233 = vrot.slane %v261, %v1232
      %v1234 = vmul.f32 %v1100, %v1229
      %v1235 = vmul.f32 %v1100, %v1233
      %v1236 = vmul.f32 %v1104, %v1229
      %v1237 = vmul.f32 %v1104, %v1233
      %v1238 = vmul.f32 %v1108, %v1229
      %v1239 = vmul.f32 %v1108, %v1233
      %v1240 = vmul.f32 %v1112, %v1229
      %v1241 = vmul.f32 %v1112, %v1233
      %v1242 = vmul.f32 %v1116, %v1229
      %v1243 = vmul.f32 %v1116, %v1233
      %v1244 = vmul.f32 %v1120, %v1229
      %v1245 = vmul.f32 %v1120, %v1233
      %v1246 = vmul.f32 %v1124, %v1229
      %v1247 = vmul.f32 %v1124, %v1233
      %v1248 = vmul.f32 %v1128, %v1229
      %v1249 = vmul.f32 %v1128, %v1233
      %v1250 = vmul.f32 %v1132, %v1229
      %v1251 = vmul.f32 %v1132, %v1233
      %v1252 = vmul.f32 %v1136, %v1229
      %v1253 = vmul.f32 %v1136, %v1233
      %v1254 = vmul.f32 %v1140, %v1229
      %v1255 = vmul.f32 %v1140, %v1233
      %v1256 = vmul.f32 %v1144, %v1229
      %v1257 = vmul.f32 %v1144, %v1233
      %v1258 = vmul.f32 %v1148, %v1229
      %v1259 = vmul.f32 %v1148, %v1233
      %v1260 = vmul.f32 %v1152, %v1229
      %v1261 = vmul.f32 %v1152, %v1233
      %v1262 = vmul.f32 %v1156, %v1229
      %v1263 = vmul.f32 %v1156, %v1233
      %v1264 = vmul.f32 %v1160, %v1229
      %v1265 = vmul.f32 %v1160, %v1233
      %v1266 = vmul.f32 %v1164, %v1229
      %v1267 = vmul.f32 %v1164, %v1233
      %v1268 = vmul.f32 %v1168, %v1229
      %v1269 = vmul.f32 %v1168, %v1233
      %v1270 = vmul.f32 %v1172, %v1229
      %v1271 = vmul.f32 %v1172, %v1233
      %v1272 = vmul.f32 %v1176, %v1229
      %v1273 = vmul.f32 %v1176, %v1233
      %v1274 = vmul.f32 %v1180, %v1229
      %v1275 = vmul.f32 %v1180, %v1233
      %v1276 = vmul.f32 %v1184, %v1229
      %v1277 = vmul.f32 %v1184, %v1233
      %v1278 = vmul.f32 %v1188, %v1229
      %v1279 = vmul.f32 %v1188, %v1233
      %v1280 = vmul.f32 %v1192, %v1229
      %v1281 = vmul.f32 %v1192, %v1233
      %v1282 = vmul.f32 %v1196, %v1229
      %v1283 = vmul.f32 %v1196, %v1233
      %v1284 = vmul.f32 %v1200, %v1229
      %v1285 = vmul.f32 %v1200, %v1233
      %v1286 = vmul.f32 %v1204, %v1229
      %v1287 = vmul.f32 %v1204, %v1233
      %v1288 = vmul.f32 %v1208, %v1229
      %v1289 = vmul.f32 %v1208, %v1233
      %v1290 = vmul.f32 %v1212, %v1229
      %v1291 = vmul.f32 %v1212, %v1233
      %v1292 = vmul.f32 %v1216, %v1229
      %v1293 = vmul.f32 %v1216, %v1233
      %v1294 = vmul.f32 %v1220, %v1229
      %v1295 = vmul.f32 %v1220, %v1233
      %v1296 = vmul.f32 %v1224, %v1229
      %v1297 = vmul.f32 %v1224, %v1233
      %v1298 = vadd.f32 %v1034, %v1234
      %v1299 = vadd.f32 %v1035, %v1235
      %v1300 = vadd.f32 %v1036, %v1236
      %v1301 = vadd.f32 %v1037, %v1237
      %v1302 = vadd.f32 %v1038, %v1238
      %v1303 = vadd.f32 %v1039, %v1239
      %v1304 = vadd.f32 %v1040, %v1240
      %v1305 = vadd.f32 %v1041, %v1241
      %v1306 = vadd.f32 %v1042, %v1242
      %v1307 = vadd.f32 %v1043, %v1243
      %v1308 = vadd.f32 %v1044, %v1244
      %v1309 = vadd.f32 %v1045, %v1245
      %v1310 = vadd.f32 %v1046, %v1246
      %v1311 = vadd.f32 %v1047, %v1247
      %v1312 = vadd.f32 %v1048, %v1248
      %v1313 = vadd.f32 %v1049, %v1249
      %v1314 = vadd.f32 %v1050, %v1250
      %v1315 = vadd.f32 %v1051, %v1251
      %v1316 = vadd.f32 %v1052, %v1252
      %v1317 = vadd.f32 %v1053, %v1253
      %v1318 = vadd.f32 %v1054, %v1254
      %v1319 = vadd.f32 %v1055, %v1255
      %v1320 = vadd.f32 %v1056, %v1256
      %v1321 = vadd.f32 %v1057, %v1257
      %v1322 = vadd.f32 %v1058, %v1258
      %v1323 = vadd.f32 %v1059, %v1259
      %v1324 = vadd.f32 %v1060, %v1260
      %v1325 = vadd.f32 %v1061, %v1261
      %v1326 = vadd.f32 %v1062, %v1262
      %v1327 = vadd.f32 %v1063, %v1263
      %v1328 = vadd.f32 %v1064, %v1264
      %v1329 = vadd.f32 %v1065, %v1265
      %v1330 = vadd.f32 %v1066, %v1266
      %v1331 = vadd.f32 %v1067, %v1267
      %v1332 = vadd.f32 %v1068, %v1268
      %v1333 = vadd.f32 %v1069, %v1269
      %v1334 = vadd.f32 %v1070, %v1270
      %v1335 = vadd.f32 %v1071, %v1271
      %v1336 = vadd.f32 %v1072, %v1272
      %v1337 = vadd.f32 %v1073, %v1273
      %v1338 = vadd.f32 %v1074, %v1274
      %v1339 = vadd.f32 %v1075, %v1275
      %v1340 = vadd.f32 %v1076, %v1276
      %v1341 = vadd.f32 %v1077, %v1277
      %v1342 = vadd.f32 %v1078, %v1278
      %v1343 = vadd.f32 %v1079, %v1279
      %v1344 = vadd.f32 %v1080, %v1280
      %v1345 = vadd.f32 %v1081, %v1281
      %v1346 = vadd.f32 %v1082, %v1282
      %v1347 = vadd.f32 %v1083, %v1283
      %v1348 = vadd.f32 %v1084, %v1284
      %v1349 = vadd.f32 %v1085, %v1285
      %v1350 = vadd.f32 %v1086, %v1286
      %v1351 = vadd.f32 %v1087, %v1287
      %v1352 = vadd.f32 %v1088, %v1288
      %v1353 = vadd.f32 %v1089, %v1289
      %v1354 = vadd.f32 %v1090, %v1290
      %v1355 = vadd.f32 %v1091, %v1291
      %v1356 = vadd.f32 %v1092, %v1292
      %v1357 = vadd.f32 %v1093, %v1293
      %v1358 = vadd.f32 %v1094, %v1294
      %v1359 = vadd.f32 %v1095, %v1295
      %v1360 = vadd.f32 %v1096, %v1296
      %v1361 = vadd.f32 %v1097, %v1297
      %v1362 = vmax.f32 %v1298, 0.0
      %v1363 = vmax.f32 %v1299, 0.0
      %v1364 = vmax.f32 %v1300, 0.0
      %v1365 = vmax.f32 %v1301, 0.0
      %v1366 = vmax.f32 %v1302, 0.0
      %v1367 = vmax.f32 %v1303, 0.0
      %v1368 = vmax.f32 %v1304, 0.0
      %v1369 = vmax.f32 %v1305, 0.0
      %v1370 = vmax.f32 %v1306, 0.0
      %v1371 = vmax.f32 %v1307, 0.0
      %v1372 = vmax.f32 %v1308, 0.0
      %v1373 = vmax.f32 %v1309, 0.0
      %v1374 = vmax.f32 %v1310, 0.0
      %v1375 = vmax.f32 %v1311, 0.0
      %v1376 = vmax.f32 %v1312, 0.0
      %v1377 = vmax.f32 %v1313, 0.0
      %v1378 = vmax.f32 %v1314, 0.0
      %v1379 = vmax.f32 %v1315, 0.0
      %v1380 = vmax.f32 %v1316, 0.0
      %v1381 = vmax.f32 %v1317, 0.0
      %v1382 = vmax.f32 %v1318, 0.0
      %v1383 = vmax.f32 %v1319, 0.0
      %v1384 = vmax.f32 %v1320, 0.0
      %v1385 = vmax.f32 %v1321, 0.0
      %v1386 = vmax.f32 %v1322, 0.0
      %v1387 = vmax.f32 %v1323, 0.0
      %v1388 = vmax.f32 %v1324, 0.0
      %v1389 = vmax.f32 %v1325, 0.0
      %v1390 = vmax.f32 %v1326, 0.0
      %v1391 = vmax.f32 %v1327, 0.0
      %v1392 = vmax.f32 %v1328, 0.0
      %v1393 = vmax.f32 %v1329, 0.0
      %v1394 = vmax.f32 %v1330, 0.0
      %v1395 = vmax.f32 %v1331, 0.0
      %v1396 = vmax.f32 %v1332, 0.0
      %v1397 = vmax.f32 %v1333, 0.0
      %v1398 = vmax.f32 %v1334, 0.0
      %v1399 = vmax.f32 %v1335, 0.0
      %v1400 = vmax.f32 %v1336, 0.0
      %v1401 = vmax.f32 %v1337, 0.0
      %v1402 = vmax.f32 %v1338, 0.0
      %v1403 = vmax.f32 %v1339, 0.0
      %v1404 = vmax.f32 %v1340, 0.0
      %v1405 = vmax.f32 %v1341, 0.0
      %v1406 = vmax.f32 %v1342, 0.0
      %v1407 = vmax.f32 %v1343, 0.0
      %v1408 = vmax.f32 %v1344, 0.0
      %v1409 = vmax.f32 %v1345, 0.0
      %v1410 = vmax.f32 %v1346, 0.0
      %v1411 = vmax.f32 %v1347, 0.0
      %v1412 = vmax.f32 %v1348, 0.0
      %v1413 = vmax.f32 %v1349, 0.0
      %v1414 = vmax.f32 %v1350, 0.0
      %v1415 = vmax.f32 %v1351, 0.0
      %v1416 = vmax.f32 %v1352, 0.0
      %v1417 = vmax.f32 %v1353, 0.0
      %v1418 = vmax.f32 %v1354, 0.0
      %v1419 = vmax.f32 %v1355, 0.0
      %v1420 = vmax.f32 %v1356, 0.0
      %v1421 = vmax.f32 %v1357, 0.0
      %v1422 = vmax.f32 %v1358, 0.0
      %v1423 = vmax.f32 %v1359, 0.0
      %v1424 = vmax.f32 %v1360, 0.0
      %v1425 = vmax.f32 %v1361, 0.0
      %v1426 = vld [vmem:[%s3] sm:$0xff]
      %v1427 = vld [vmem:[%s3 + $0x8] sm:$0xff]
      %v1428 = vld [vmem:[%s3 + $0x10] sm:$0xff]
      %v1429 = vld [vmem:[%s3 + $0x18] sm:$0xff]
      %v1430 = vld [vmem:[%s3 + $0x20] sm:$0xff]
      %v1431 = vld [vmem:[%s3 + $0x28] sm:$0xff]
      %v1432 = vld [vmem:[%s3 + $0x30] sm:$0xff]
      %v1433 = vld [vmem:[%s3 + $0x38] sm:$0xff]
      %v1434 = vld [vmem:[%s3 + $0x40] sm:$0xff]
      %v1435 = vld [vmem:[%s3 + $0x48] sm:$0xff]
      %v1436 = vld [vmem:[%s3 + $0x50] sm:$0xff]
      %v1437 = vld [vmem:[%s3 + $0x58] sm:$0xff]
      %v1438 = vld [vmem:[%s3 + $0x60] sm:$0xff]
      %v1439 = vld [vmem:[%s3 + $0x68] sm:$0xff]
      %v1440 = vld [vmem:[%s3 + $0x70] sm:$0xff]
      %v1441 = vld [vmem:[%s3 + $0x78] sm:$0xff]
      %v1442 = vld [vmem:[%s3 + $0x80] sm:$0xff]
      %v1443 = vld [vmem:[%s3 + $0x88] sm:$0xff]
      %v1444 = vld [vmem:[%s3 + $0x90] sm:$0xff]
      %v1445 = vld [vmem:[%s3 + $0x98] sm:$0xff]
      %v1446 = vld [vmem:[%s3 + $0xa0] sm:$0xff]
      %v1447 = vld [vmem:[%s3 + $0xa8] sm:$0xff]
      %v1448 = vld [vmem:[%s3 + $0xb0] sm:$0xff]
      %v1449 = vld [vmem:[%s3 + $0xb8] sm:$0xff]
      %v1450 = vld [vmem:[%s3 + $0xc0] sm:$0xff]
      %v1451 = vld [vmem:[%s3 + $0xc8] sm:$0xff]
      %v1452 = vld [vmem:[%s3 + $0xd0] sm:$0xff]
      %v1453 = vld [vmem:[%s3 + $0xd8] sm:$0xff]
      %v1454 = vld [vmem:[%s3 + $0xe0] sm:$0xff]
      %v1455 = vld [vmem:[%s3 + $0xe8] sm:$0xff]
      %v1456 = vld [vmem:[%s3 + $0xf0] sm:$0xff]
      %v1457 = vld [vmem:[%s3 + $0xf8] sm:$0xff]
      %v1458 = vld [vmem:[%s4] sm:$0x1]
      %v1460 = vlaneseq
      %v1461 = vshrl.u32 %v1460, 7
      %v1462 = vsub.s32 0, %v1461
      %v1463 = vrot.slane %v1458, %v1462
      %1465 = vmatprep.subr.mxu0 0.0
      %1466 = vmatpush1.msra.mxu0 %v1441
      %1467 = vmatprep.subr.mxu0 0.0
      %1468 = vmatpush1.msra.mxu0 %v1440
      %1469 = vmatprep.subr.mxu0 0.0
      %1470 = vmatpush1.msra.mxu0 %v1439
      %1471 = vmatprep.subr.mxu0 0.0
      %1472 = vmatpush1.msra.mxu0 %v1438
      %1473 = vmatprep.subr.mxu0 0.0
      %1474 = vmatpush1.msra.mxu0 %v1437
      %1475 = vmatprep.subr.mxu0 0.0
      %1476 = vmatpush1.msra.mxu0 %v1436
      %1477 = vmatprep.subr.mxu0 0.0
      %1478 = vmatpush1.msra.mxu0 %v1435
      %1479 = vmatprep.subr.mxu0 0.0
      %1480 = vmatpush1.msra.mxu0 %v1434
      %1481 = vmatprep.subr.mxu0 0.0
      %1482 = vmatpush1.msra.mxu0 %v1433
      %1483 = vmatprep.subr.mxu0 0.0
      %1484 = vmatpush1.msra.mxu0 %v1432
      %1485 = vmatprep.subr.mxu0 0.0
      %1486 = vmatpush1.msra.mxu0 %v1431
      %1487 = vmatprep.subr.mxu0 0.0
      %1488 = vmatpush1.msra.mxu0 %v1430
      %1489 = vmatprep.subr.mxu0 0.0
      %1490 = vmatpush1.msra.mxu0 %v1429
      %1491 = vmatprep.subr.mxu0 0.0
      %1492 = vmatpush1.msra.mxu0 %v1428
      %1493 = vmatprep.subr.mxu0 0.0
      %1494 = vmatpush1.msra.mxu0 %v1427
      %1495 = vmatprep.subr.mxu0 0.0
      %1496 = vmatpush1.msra.mxu0 %v1426
      %1497 = vmatprep.subr.mxu0 0.0
      %1498 = vmatpush2.msra.mxu0 %v1457
      %1499 = vmatprep.subr.mxu0 0.0
      %1500 = vmatpush2.msra.mxu0 %v1456
      %1501 = vmatprep.subr.mxu0 0.0
      %1502 = vmatpush2.msra.mxu0 %v1455
      %1503 = vmatprep.subr.mxu0 0.0
      %1504 = vmatpush2.msra.mxu0 %v1454
      %1505 = vmatprep.subr.mxu0 0.0
      %1506 = vmatpush2.msra.mxu0 %v1453
      %1507 = vmatprep.subr.mxu0 0.0
      %1508 = vmatpush2.msra.mxu0 %v1452
      %1509 = vmatprep.subr.mxu0 0.0
      %1510 = vmatpush2.msra.mxu0 %v1451
      %1511 = vmatprep.subr.mxu0 0.0
      %1512 = vmatpush2.msra.mxu0 %v1450
      %1513 = vmatprep.subr.mxu0 0.0
      %1514 = vmatpush2.msra.mxu0 %v1449
      %1515 = vmatprep.subr.mxu0 0.0
      %1516 = vmatpush2.msra.mxu0 %v1448
      %1517 = vmatprep.subr.mxu0 0.0
      %1518 = vmatpush2.msra.mxu0 %v1447
      %1519 = vmatprep.subr.mxu0 0.0
      %1520 = vmatpush2.msra.mxu0 %v1446
      %1521 = vmatprep.subr.mxu0 0.0
      %1522 = vmatpush2.msra.mxu0 %v1445
      %1523 = vmatprep.subr.mxu0 0.0
      %1524 = vmatpush2.msra.mxu0 %v1444
      %1525 = vmatprep.subr.mxu0 0.0
      %1526 = vmatpush2.msra.mxu0 %v1443
      %1527 = vmatprep.subr.mxu0 0.0
      %1528 = vmatpush2.msra.mxu0 %v1442
      %1529 = vmatprep.mubr.f32.mxu0 %v1363
      %1530 = vmatmul.mubr.f32.gmra.mxu0 %v1362
      %v1531 = vpop.f32.mrf.mxu0
      %v1532 = vadd.f32 %v1463, %v1531
      %v1533 = vpop.f32.mrf.mxu0
      %1534 = vmatprep.mubr.f32.mxu0 %v1365
      %1535 = vmatmul.mubr.f32.gmra.mxu0 %v1364
      %v1536 = vpop.f32.mrf.mxu0
      %v1537 = vadd.f32 %v1463, %v1536
      %v1538 = vpop.f32.mrf.mxu0
      %1539 = vmatprep.mubr.f32.mxu0 %v1367
      %1540 = vmatmul.mubr.f32.gmra.mxu0 %v1366
      %v1541 = vpop.f32.mrf.mxu0
      %v1542 = vadd.f32 %v1463, %v1541
      %v1543 = vpop.f32.mrf.mxu0
      %1544 = vmatprep.mubr.f32.mxu0 %v1369
      %1545 = vmatmul.mubr.f32.gmra.mxu0 %v1368
      %v1546 = vpop.f32.mrf.mxu0
      %v1547 = vadd.f32 %v1463, %v1546
      %v1548 = vpop.f32.mrf.mxu0
      %1549 = vmatprep.mubr.f32.mxu0 %v1371
      %1550 = vmatmul.mubr.f32.gmra.mxu0 %v1370
      %v1551 = vpop.f32.mrf.mxu0
      %v1552 = vadd.f32 %v1463, %v1551
      %v1553 = vpop.f32.mrf.mxu0
      %1554 = vmatprep.mubr.f32.mxu0 %v1373
      %1555 = vmatmul.mubr.f32.gmra.mxu0 %v1372
      %v1556 = vpop.f32.mrf.mxu0
      %v1557 = vadd.f32 %v1463, %v1556
      %v1558 = vpop.f32.mrf.mxu0
      %1559 = vmatprep.mubr.f32.mxu0 %v1375
      %1560 = vmatmul.mubr.f32.gmra.mxu0 %v1374
      %v1561 = vpop.f32.mrf.mxu0
      %v1562 = vadd.f32 %v1463, %v1561
      %v1563 = vpop.f32.mrf.mxu0
      %1564 = vmatprep.mubr.f32.mxu0 %v1377
      %1565 = vmatmul.mubr.f32.gmra.mxu0 %v1376
      %v1566 = vpop.f32.mrf.mxu0
      %v1567 = vadd.f32 %v1463, %v1566
      %v1568 = vpop.f32.mrf.mxu0
      %1569 = vmatprep.mubr.f32.mxu0 %v1379
      %1570 = vmatmul.mubr.f32.gmra.mxu0 %v1378
      %v1571 = vpop.f32.mrf.mxu0
      %v1572 = vadd.f32 %v1463, %v1571
      %v1573 = vpop.f32.mrf.mxu0
      %1574 = vmatprep.mubr.f32.mxu0 %v1381
      %1575 = vmatmul.mubr.f32.gmra.mxu0 %v1380
      %v1576 = vpop.f32.mrf.mxu0
      %v1577 = vadd.f32 %v1463, %v1576
      %v1578 = vpop.f32.mrf.mxu0
      %1579 = vmatprep.mubr.f32.mxu0 %v1383
      %1580 = vmatmul.mubr.f32.gmra.mxu0 %v1382
      %v1581 = vpop.f32.mrf.mxu0
      %v1582 = vadd.f32 %v1463, %v1581
      %v1583 = vpop.f32.mrf.mxu0
      %1584 = vmatprep.mubr.f32.mxu0 %v1385
      %1585 = vmatmul.mubr.f32.gmra.mxu0 %v1384
      %v1586 = vpop.f32.mrf.mxu0
      %v1587 = vadd.f32 %v1463, %v1586
      %v1588 = vpop.f32.mrf.mxu0
      %1589 = vmatprep.mubr.f32.mxu0 %v1387
      %1590 = vmatmul.mubr.f32.gmra.mxu0 %v1386
      %v1591 = vpop.f32.mrf.mxu0
      %v1592 = vadd.f32 %v1463, %v1591
      %v1593 = vpop.f32.mrf.mxu0
      %1594 = vmatprep.mubr.f32.mxu0 %v1389
      %1595 = vmatmul.mubr.f32.gmra.mxu0 %v1388
      %v1596 = vpop.f32.mrf.mxu0
      %v1597 = vadd.f32 %v1463, %v1596
      %v1598 = vpop.f32.mrf.mxu0
      %1599 = vmatprep.mubr.f32.mxu0 %v1391
      %1600 = vmatmul.mubr.f32.gmra.mxu0 %v1390
      %v1601 = vpop.f32.mrf.mxu0
      %v1602 = vadd.f32 %v1463, %v1601
      %v1603 = vpop.f32.mrf.mxu0
      %1604 = vmatprep.mubr.f32.mxu0 %v1393
      %1605 = vmatmul.mubr.f32.gmra.mxu0 %v1392
      %v1606 = vpop.f32.mrf.mxu0
      %v1607 = vadd.f32 %v1463, %v1606
      %v1608 = vpop.f32.mrf.mxu0
      %1609 = vmatprep.mubr.f32.mxu0 %v1395
      %1610 = vmatmul.mubr.f32.gmra.mxu0 %v1394
      %v1611 = vpop.f32.mrf.mxu0
      %v1612 = vadd.f32 %v1463, %v1611
      %v1613 = vpop.f32.mrf.mxu0
      %1614 = vmatprep.mubr.f32.mxu0 %v1397
      %1615 = vmatmul.mubr.f32.gmra.mxu0 %v1396
      %v1616 = vpop.f32.mrf.mxu0
      %v1617 = vadd.f32 %v1463, %v1616
      %v1618 = vpop.f32.mrf.mxu0
      %1619 = vmatprep.mubr.f32.mxu0 %v1399
      %1620 = vmatmul.mubr.f32.gmra.mxu0 %v1398
      %v1621 = vpop.f32.mrf.mxu0
      %v1622 = vadd.f32 %v1463, %v1621
      %v1623 = vpop.f32.mrf.mxu0
      %1624 = vmatprep.mubr.f32.mxu0 %v1401
      %1625 = vmatmul.mubr.f32.gmra.mxu0 %v1400
      %v1626 = vpop.f32.mrf.mxu0
      %v1627 = vadd.f32 %v1463, %v1626
      %v1628 = vpop.f32.mrf.mxu0
      %1629 = vmatprep.mubr.f32.mxu0 %v1403
      %1630 = vmatmul.mubr.f32.gmra.mxu0 %v1402
      %v1631 = vpop.f32.mrf.mxu0
      %v1632 = vadd.f32 %v1463, %v1631
      %v1633 = vpop.f32.mrf.mxu0
      %1634 = vmatprep.mubr.f32.mxu0 %v1405
      %1635 = vmatmul.mubr.f32.gmra.mxu0 %v1404
      %v1636 = vpop.f32.mrf.mxu0
      %v1637 = vadd.f32 %v1463, %v1636
      %v1638 = vpop.f32.mrf.mxu0
      %1639 = vmatprep.mubr.f32.mxu0 %v1407
      %1640 = vmatmul.mubr.f32.gmra.mxu0 %v1406
      %v1641 = vpop.f32.mrf.mxu0
      %v1642 = vadd.f32 %v1463, %v1641
      %v1643 = vpop.f32.mrf.mxu0
      %1644 = vmatprep.mubr.f32.mxu0 %v1409
      %1645 = vmatmul.mubr.f32.gmra.mxu0 %v1408
      %v1646 = vpop.f32.mrf.mxu0
      %v1647 = vadd.f32 %v1463, %v1646
      %v1648 = vpop.f32.mrf.mxu0
      %1649 = vmatprep.mubr.f32.mxu0 %v1411
      %1650 = vmatmul.mubr.f32.gmra.mxu0 %v1410
      %v1651 = vpop.f32.mrf.mxu0
      %v1652 = vadd.f32 %v1463, %v1651
      %v1653 = vpop.f32.mrf.mxu0
      %1654 = vmatprep.mubr.f32.mxu0 %v1413
      %1655 = vmatmul.mubr.f32.gmra.mxu0 %v1412
      %v1656 = vpop.f32.mrf.mxu0
      %v1657 = vadd.f32 %v1463, %v1656
      %v1658 = vpop.f32.mrf.mxu0
      %1659 = vmatprep.mubr.f32.mxu0 %v1415
      %1660 = vmatmul.mubr.f32.gmra.mxu0 %v1414
      %v1661 = vpop.f32.mrf.mxu0
      %v1662 = vadd.f32 %v1463, %v1661
      %v1663 = vpop.f32.mrf.mxu0
      %1664 = vmatprep.mubr.f32.mxu0 %v1417
      %1665 = vmatmul.mubr.f32.gmra.mxu0 %v1416
      %v1666 = vpop.f32.mrf.mxu0
      %v1667 = vadd.f32 %v1463, %v1666
      %v1668 = vpop.f32.mrf.mxu0
      %1669 = vmatprep.mubr.f32.mxu0 %v1419
      %1670 = vmatmul.mubr.f32.gmra.mxu0 %v1418
      %v1671 = vpop.f32.mrf.mxu0
      %v1672 = vadd.f32 %v1463, %v1671
      %v1673 = vpop.f32.mrf.mxu0
      %1674 = vmatprep.mubr.f32.mxu0 %v1421
      %1675 = vmatmul.mubr.f32.gmra.mxu0 %v1420
      %v1676 = vpop.f32.mrf.mxu0
      %v1677 = vadd.f32 %v1463, %v1676
      %v1678 = vpop.f32.mrf.mxu0
      %1679 = vmatprep.mubr.f32.mxu0 %v1423
      %1680 = vmatmul.mubr.f32.gmra.mxu0 %v1422
      %v1681 = vpop.f32.mrf.mxu0
      %v1682 = vadd.f32 %v1463, %v1681
      %v1683 = vpop.f32.mrf.mxu0
      %1684 = vmatprep.mubr.f32.mxu0 %v1425
      %1685 = vmatmul.mubr.f32.gmra.mxu0 %v1424
      %v1686 = vpop.f32.mrf.mxu0
      %v1687 = vadd.f32 %v1463, %v1686
      %v1688 = vpop.f32.mrf.mxu0
      %1689 = vdwg.mxu0
      %vm1690 = vcmask 23552
      %1691 = vst.msk [vmem:[%s226] sm:$0xff] %vm1690, %v1532
      %1692 = vst.msk [vmem:[%s226 + $0x8] sm:$0xff] %vm1690, %v1537
      %1693 = vst.msk [vmem:[%s226 + $0x10] sm:$0xff] %vm1690, %v1542
      %1694 = vst.msk [vmem:[%s226 + $0x18] sm:$0xff] %vm1690, %v1547
      %1695 = vst.msk [vmem:[%s226 + $0x20] sm:$0xff] %vm1690, %v1552
      %1696 = vst.msk [vmem:[%s226 + $0x28] sm:$0xff] %vm1690, %v1557
      %1697 = vst.msk [vmem:[%s226 + $0x30] sm:$0xff] %vm1690, %v1562
      %1698 = vst.msk [vmem:[%s226 + $0x38] sm:$0xff] %vm1690, %v1567
      %1699 = vst.msk [vmem:[%s226 + $0x40] sm:$0xff] %vm1690, %v1572
      %1700 = vst.msk [vmem:[%s226 + $0x48] sm:$0xff] %vm1690, %v1577
      %1701 = vst.msk [vmem:[%s226 + $0x50] sm:$0xff] %vm1690, %v1582
      %1702 = vst.msk [vmem:[%s226 + $0x58] sm:$0xff] %vm1690, %v1587
      %1703 = vst.msk [vmem:[%s226 + $0x60] sm:$0xff] %vm1690, %v1592
      %1704 = vst.msk [vmem:[%s226 + $0x68] sm:$0xff] %vm1690, %v1597
      %1705 = vst.msk [vmem:[%s226 + $0x70] sm:$0xff] %vm1690, %v1602
      %1706 = vst.msk [vmem:[%s226 + $0x78] sm:$0xff] %vm1690, %v1607
      %1707 = vst.msk [vmem:[%s226 + $0x80] sm:$0xff] %vm1690, %v1612
      %1708 = vst.msk [vmem:[%s226 + $0x88] sm:$0xff] %vm1690, %v1617
      %1709 = vst.msk [vmem:[%s226 + $0x90] sm:$0xff] %vm1690, %v1622
      %1710 = vst.msk [vmem:[%s226 + $0x98] sm:$0xff] %vm1690, %v1627
      %1711 = vst.msk [vmem:[%s226 + $0xa0] sm:$0xff] %vm1690, %v1632
      %1712 = vst.msk [vmem:[%s226 + $0xa8] sm:$0xff] %vm1690, %v1637
      %1713 = vst.msk [vmem:[%s226 + $0xb0] sm:$0xff] %vm1690, %v1642
      %1714 = vst.msk [vmem:[%s226 + $0xb8] sm:$0xff] %vm1690, %v1647
      %1715 = vst.msk [vmem:[%s226 + $0xc0] sm:$0xff] %vm1690, %v1652
      %1716 = vst.msk [vmem:[%s226 + $0xc8] sm:$0xff] %vm1690, %v1657
      %1717 = vst.msk [vmem:[%s226 + $0xd0] sm:$0xff] %vm1690, %v1662
      %1718 = vst.msk [vmem:[%s226 + $0xd8] sm:$0xff] %vm1690, %v1667
      %1719 = vst.msk [vmem:[%s226 + $0xe0] sm:$0xff] %vm1690, %v1672
      %1720 = vst.msk [vmem:[%s226 + $0xe8] sm:$0xff] %vm1690, %v1677
      %1721 = vst.msk [vmem:[%s226 + $0xf0] sm:$0xff] %vm1690, %v1682
      %1722 = vst.msk [vmem:[%s226 + $0xf8] sm:$0xff] %vm1690, %v1687
      %s1723 = smul.u32 32, %s16
      %p1724 = scmp.lt.s32.totalorder %s1723, 63
      %s1725 = scalar_select %p1724, %s1723, 63
      %s1726 = smul.addr %s1725, 8
      %s1727 = scalar_lea.vmem %s5, %s1726
      // Predicated region
      $region41: #{tpu_custom_call.1} parent=39 // pred_check
        %p1728 = pneg %p144
      $region42: #{tpu_custom_call.1} parent=39 // pred_check_branch
        %1730 = sbr.rel (%p1728) target = $region44
      $region43: #{tpu_custom_call.1} parent=39 // pred_region
        %s1731 = smul.u32 32, %s16
      $region44: #{tpu_custom_call.1} parent=39 // pred_fallthru
        _
    $region40: #{tpu_custom_call.1} parent=5 // pred_fallthru
      _
    %p1732 = scmp.le.s32.totalorder 2, %s11
    // Predicated region
    $region45: #{tpu_custom_call.1} parent=5 // pred_check
      %p1733 = pneg %p1732
    $region46: #{tpu_custom_call.1} parent=5 // pred_check_branch
      %1735 = sbr.rel (%p1733) target = $region48
    $region47: #{tpu_custom_call.1} parent=5 // pred_region
      %s1736 = ssub.s32 %s11, 2
      // Predicated region
      $region49: #{tpu_custom_call.1} parent=47 // pred_check
        %p1737 = pneg %p150
      $region50: #{tpu_custom_call.1} parent=47 // pred_check_branch
        %1739 = sbr.rel (%p1737) target = $region52
      $region51: #{tpu_custom_call.1} parent=47 // pred_region
        %s1740 = smul.u32 32, %s17
        %p1741 = scmp.lt.s32.totalorder %s1740, 63
        %s1742 = scalar_select %p1741, %s1740, 63
        %s1743 = smul.addr %s1742, 8
        %s1744 = scalar_lea.vmem %s5, %s1743
      $region52: #{tpu_custom_call.1} parent=47 // pred_fallthru
        _
    $region48: #{tpu_custom_call.1} parent=5 // pred_fallthru
      _
  $region6: #{tpu_custom_call.1} parent=0 // loop_footer
    %s15 = sadd.s32 1, %s11
  $region7: #{tpu_custom_call.1} parent=0 // loop_footer_branch
    %10 = sbr.rel target = $region3
  $region8: #{tpu_custom_call.1} parent=0 // loop_exit
    _

</llo_original>
